<compile_context>
chip_gen: v5e
topology: v5e:2x2
jax: 0.10.0
libtpu: 0.0.40
codegen_flags: <defaults>
</compile_context>

<pallas_src>
import functools

import jax
import jax.numpy as jnp
import numpy as np
from jax.experimental import pallas as pl
from jax.experimental.pallas import tpu as pltpu


def _cdiv(a, b):
    return -(-a // b)


def _round_up(a, b):
    return _cdiv(a, b) * b


def _rbf_kernel(w_ref, x_ref, o_ref, *, segments, mu_vals, neg_inv_2s2,
                delta_over_s2, clamp_lo, clamp_hi, num_k, use_recurrence):
    """One (rb, cb) spatial tile of one (n, c) pair.

    w_ref : (C*K,) SMEM  folded per-channel weights  w[c,k] * P[k]
    x_ref : (rb, cb) VMEM input tile
    o_ref : (rb, cb) VMEM output tile
    """
    c = pl.program_id(1)            # channel = grid axis -> scalar SMEM reads
    base = c * num_k
    x = x_ref[...].astype(jnp.float32)

    if use_recurrence:
        # Clamp x so the shared ratio exps stay finite.  The clamp only
        # affects points that are >= 15 sigma outside [mu_0, mu_{K-1}], where
        # every Gaussian is exactly 0 in f32, so results are unaffected.
        x = jnp.clip(x, clamp_lo, clamp_hi)
        t = x * delta_over_s2
        a_up = jnp.exp(t)           # exp(+x*Delta/sigma^2)
        a_dn = jnp.exp(-t)          # exp(-x*Delta/sigma^2)

    acc = None
    for (start, anchor, end) in segments:
        # Exact (EUP) Gaussian at the segment's central anchor.
        d = x - mu_vals[anchor]
        g = jnp.exp((d * d) * neg_inv_2s2)
        term = w_ref[base + anchor] * g
        acc = term if acc is None else acc + term
        if use_recurrence:
            # Damped geometric recurrence outwards from the anchor (VPU only):
            #   g_k = g_anchor * a_up^(k-anchor) * P_k   (k > anchor)
            #   g_k = g_anchor * a_dn^(anchor-k) * P_k   (k < anchor)
            # P_k is folded into w_ref, so per-k work is mul + mul + add, and
            # q is bounded by the host-side guards (no overflow / NaN).
            q = g
            for k in range(anchor + 1, end):
                q = q * a_up
                acc = acc + w_ref[base + k] * q
            q = g
            for k in range(anchor - 1, start - 1, -1):
                q = q * a_dn
                acc = acc + w_ref[base + k] * q

    o_ref[...] = acc.astype(o_ref.dtype)


def _plan_rbf_recurrence(mu_host, sigma, anchor_stride):
    """Host-side planning: segmentation, folded constants, safety guards.

    Returns (segments, p_fold, delta_over_s2, clamp_lo, clamp_hi, use_rec).
    Falls back to the exact per-k exp path (stride 1) whenever the geometric
    recurrence cannot be proven overflow-free and accurate for (mu, sigma).
    """
    K = int(mu_host.shape[0])
    s2 = sigma * sigma
    stride = max(1, min(int(anchor_stride), K))

    delta = float(mu_host[1] - mu_host[0]) if K > 1 else 0.0
    uniform = (K > 1 and delta > 0.0 and
               bool(np.allclose(np.diff(mu_host), delta, rtol=1e-5, atol=1e-7)))
    if not uniform:
        stride = 1   # TODO(synk): non-uniform mu -> exact per-k exp fallback

    clamp_hi = float(mu_host[-1]) + 15.0 * sigma
    clamp_lo = float(mu_host[0]) - 15.0 * sigma

    while stride > 1:
        segments = []
        for s0 in range(0, K, stride):
            s1 = min(s0 + stride, K)
            segments.append((s0, s0 + (s1 - s0) // 2, s1))
        max_off = max(max(a - s0, s1 - 1 - a) for s0, a, s1 in segments)

        # x-independent fold constants P_k (log-space, f64).
        logp = np.zeros((K,), dtype=np.float64)
        for s0, a, s1 in segments:
            for k in range(a + 1, s1):
                logp[k] = logp[k - 1] - delta * (mu_host[k - 1] + mu_host[k]) / (2.0 * s2)
            for k in range(a - 1, s0 - 1, -1):
                logp[k] = logp[k + 1] + delta * (mu_host[k] + mu_host[k + 1]) / (2.0 * s2)

        # Worst-case log of the running term q = g_anchor * fac^j over all x.
        q_log_max = 0.0
        for s0, a, s1 in segments:
            for k in range(s0, s1):
                j = abs(k - a)
                q_log_max = max(q_log_max,
                                j * j * delta * delta / (2.0 * s2)
                                + j * abs(float(mu_host[a])) * delta / s2)

        safe = (
            # (a) flush-to-zero anchors can only hide terms << atol
            max_off * delta <= 7.0 * sigma + 1e-12
            # (b) folded weights stay representable in f32 for any sane |w|
            and float(np.max(np.abs(logp))) <= 60.0
            # (c) running recurrence term can never overflow f32
            and q_log_max <= 85.0
            # (d) shared ratio exp(+-x*Delta/sigma^2) finite for clamped x
            and max(abs(clamp_hi), abs(clamp_lo)) * delta / s2 <= 85.0
        )
        if safe:
            return (tuple(segments), np.exp(logp), delta / s2,
                    clamp_lo, clamp_hi, True)
        stride -= 1

    segments = tuple((k, k, k + 1) for k in range(K))
    return segments, np.ones((K,), dtype=np.float64), 0.0, 0.0, 0.0, False


def rbf_activation_pallas(x, w_table, mu, sigma, *,
                          row_block=256, col_block=1024, anchor_stride=8):
    """Forward pass of RBFActivation.

    x: (N,C,Z,H,W) f32; w_table: (C,K) f32 (runtime, may be traced);
    mu: (K,) and sigma: scalar are structural module constants and must be
    concrete (calling with traced mu/sigma under jit is not supported).
    """
    N, C, Z, H, W = x.shape
    K = int(w_table.shape[-1])
    S = Z * H * W
    sigma = float(sigma)
    mu_host = np.asarray(jax.device_get(mu), dtype=np.float64).reshape(-1)

    (segments, p_fold, delta_over_s2, clamp_lo, clamp_hi,
     use_rec) = _plan_rbf_recurrence(mu_host, sigma, anchor_stride)

    # Fold the x-independent recurrence constants into the runtime weights
    # (tiny (C,K) elementwise multiply in XLA), then flatten to 1-D for SMEM.
    w_folded = (w_table.astype(jnp.float32)
                * jnp.asarray(p_fold, jnp.float32)[None, :]).reshape(C * K)

    # ---- spatial tiling: each (n, c) volume as a lane-dense (rows, cb) slab --
    col_block = max(128, (int(col_block) // 128) * 128)
    row_block = max(8, (int(row_block) // 8) * 8)
    rows_full_cb = _cdiv(S, col_block)
    if _round_up(rows_full_cb, 8) <= row_block:
        # Small / medium volume: one tile per (n, c); pad bounded by ~cb*8.
        rb = rows_p = max(8, _round_up(rows_full_cb, 8))
        cb = max(128, _round_up(_cdiv(S, rows_p), 128))
    else:
        # Large volume: full-width tiles, rows split as evenly as possible.
        cb = col_block
        rows = _cdiv(S, cb)
        n_tiles = _cdiv(rows, row_block)
        rb = min(_round_up(_cdiv(rows, n_tiles), 8), row_block)
        rows_p = _round_up(rows, rb)
    num_tiles = rows_p // rb
    SP = rows_p * cb

    x_flat = x.reshape(N, C, S)
    if SP != S:
        # TODO(synk): handle the ragged tail in-kernel instead of an extra
        # pad (and slice below) HBM pass; tiling keeps the pad small.
        x_flat = jnp.pad(x_flat, ((0, 0), (0, 0), (0, SP - S)))
    x4 = x_flat.reshape(N, C, rows_p, cb)

    kernel = functools.partial(
        _rbf_kernel,
        segments=segments,
        mu_vals=tuple(float(m) for m in mu_host),
        neg_inv_2s2=float(-1.0 / (2.0 * sigma * sigma)),
        delta_over_s2=float(delta_over_s2),
        clamp_lo=float(clamp_lo), clamp_hi=float(clamp_hi),
        num_k=K, use_recurrence=use_rec)

    out4 = pl.pallas_call(
        kernel,
        out_shape=jax.ShapeDtypeStruct((N, C, rows_p, cb), x.dtype),
        grid_spec=pltpu.PrefetchScalarGridSpec(
            num_scalar_prefetch=0,
            grid=(N, C, num_tiles),
            in_specs=[
                pl.BlockSpec(memory_space=pltpu.MemorySpace.SMEM),   # w' (C*K,)
                pl.BlockSpec((None, None, rb, cb), lambda n, c, t: (n, c, t, 0)),
            ],
            out_specs=pl.BlockSpec((None, None, rb, cb),
                                   lambda n, c, t: (n, c, t, 0)),
        ),
        compiler_params=pltpu.CompilerParams(
            # all axes independent -> megacore / 2-TC sharding on v7x
            dimension_semantics=("parallel", "parallel", "parallel"),
            # explicit limit: > v5e's 16 MiB default, <= v7x's physical 64 MiB
            vmem_limit_bytes=32 * 1024 * 1024),
    )(w_folded, x4)

    out = out4.reshape(N, C, SP)
    if SP != S:
        out = out[:, :, :S]
    return out.reshape(N, C, Z, H, W)


def make_rbf_params(vmin, vmax, num_act_weights, features_out, init_type, init_scale):
    """Deterministic parameter construction mirroring RBFActivation.__init__."""
    x_0 = np.linspace(vmin, vmax, num_act_weights, dtype=np.float32)
    mu = np.linspace(vmin, vmax, num_act_weights, dtype=np.float32)
    sigma = 2.0 * vmax / (num_act_weights - 1)
    if init_type == 'linear':
        w_0 = init_scale * x_0
    elif init_type == 'tv':
        w_0 = init_scale * np.sign(x_0)
    elif init_type == 'relu':
        w_0 = init_scale * np.maximum(x_0, 0)
    elif init_type == 'student-t':
        alpha = 100
        w_0 = init_scale * np.sqrt(alpha) * x_0 / (1 + 0.5 * alpha * x_0 ** 2)
    else:
        raise ValueError("init_type '%s' not defined!" % init_type)
    # (1, C, 1, 1, 1, K) in the torch module -> keep only the (C, K) content
    w_table = np.repeat(w_0.reshape(1, num_act_weights), features_out, axis=0)
    return (jnp.asarray(w_table, jnp.float32),
            jnp.asarray(mu, jnp.float32),
            float(sigma))


def rbf_activation_ref(x, w_table, mu, sigma):
    """Pure-JAX reference for correctness check."""
    diff = x[..., None] - mu                                   # (N,C,Z,H,W,K)
    gauss = jnp.exp(-(diff ** 2) / (2.0 * sigma ** 2))
    w6 = w_table[None, :, None, None, None, :]                 # (1,C,1,1,1,K)
    return jnp.sum(w6 * gauss, axis=-1)


if __name__ == "__main__":
    # Small config consistent with the module (5-D input N x C x Z x H x W).
    N, C, Z, H, W = 2, 4, 8, 32, 32
    num_act_weights = 31
    vmin, vmax = -1.0, 1.0

    w_table, mu, sigma = make_rbf_params(
        vmin=vmin, vmax=vmax, num_act_weights=num_act_weights,
        features_out=C, init_type='linear', init_scale=0.04)

    key = jax.random.PRNGKey(0)
    k1, k2 = jax.random.split(key)
    x = jax.random.normal(k1, (N, C, Z, H, W), dtype=jnp.float32) * 0.5

    out = jax.block_until_ready(rbf_activation_pallas(x, w_table, mu, sigma))
    ref = rbf_activation_ref(x, w_table, mu, sigma)
    np.testing.assert_allclose(np.asarray(out), np.asarray(ref),
                               rtol=1e-4, atol=1e-5)

    # Ragged spatial extent -> exercises the padding / un-padding path.
    x2 = jax.random.normal(k2, (1, C, 2, 7, 9), dtype=jnp.float32) * 0.5
    out2 = jax.block_until_ready(rbf_activation_pallas(x2, w_table, mu, sigma))
    ref2 = rbf_activation_ref(x2, w_table, mu, sigma)
    np.testing.assert_allclose(np.asarray(out2), np.asarray(ref2),
                               rtol=1e-4, atol=1e-5)

    print("KERNEL_OK")
</pallas_src>

<mosaic_0001>
module attributes {stable_mosaic.version = 11 : i64} {
  func.func @_rbf_kernel(%arg0: i32, %arg1: i32, %arg2: i32, %arg3: memref<124xf32, #tpu.memory_space<smem>>, %arg4: memref<1x1x8x1024xf32, #tpu.memory_space<vmem>>, %arg5: memref<1x1x8x1024xf32, #tpu.memory_space<vmem>>) attributes {dimension_semantics = [#tpu.dimension_semantics<parallel>, #tpu.dimension_semantics<parallel>, #tpu.dimension_semantics<parallel>], iteration_bounds = array<i64: 2, 4, 1>, scalar_prefetch = 0 : i64, scratch_operands = 0 : i64, tpu.core_type = #tpu.core_type<tc>, window_params = [{transform_indices = @transform_0, window_bounds = array<i64: 124>}, {transform_indices = @transform_1, window_bounds = array<i64: 1, 1, 8, 1024>}, {transform_indices = @transform_2, window_bounds = array<i64: 1, 1, 8, 1024>}]} {
    %c31_i32 = arith.constant 31 : i32
    %0 = arith.muli %arg1, %c31_i32 : i32
    %c0 = arith.constant 0 : index
    %c0_0 = arith.constant 0 : index
    %c0_1 = arith.constant 0 : index
    %c0_2 = arith.constant 0 : index
    %1 = vector.load %arg4[%c0, %c0_0, %c0_1, %c0_2] : memref<1x1x8x1024xf32, #tpu.memory_space<vmem>>, vector<1x1x8x1024xf32>
    %2 = vector.shape_cast %1 : vector<1x1x8x1024xf32> to vector<8x1024xf32>
    %cst = arith.constant -2.000000e+00 : f32
    %cst_3 = arith.constant 2.000000e+00 : f32
    %3 = vector.broadcast %cst : f32 to vector<8x1024xf32>
    %4 = arith.maximumf %3, %2 : vector<8x1024xf32>
    %5 = vector.broadcast %cst_3 : f32 to vector<8x1024xf32>
    %6 = arith.minimumf %5, %4 : vector<8x1024xf32>
    %cst_4 = arith.constant 14.999999 : f32
    %7 = vector.broadcast %cst_4 : f32 to vector<8x1024xf32>
    %8 = arith.mulf %6, %7 : vector<8x1024xf32>
    %9 = math.exp %8 : vector<8x1024xf32>
    %cst_5 = arith.constant 0.000000e+00 : f32
    %10 = vector.broadcast %cst_5 : f32 to vector<8x1024xf32>
    %11 = arith.subf %10, %8 : vector<8x1024xf32>
    %12 = math.exp %11 : vector<8x1024xf32>
    %cst_6 = arith.constant -0.733333349 : f32
    %13 = vector.broadcast %cst_6 : f32 to vector<8x1024xf32>
    %14 = arith.subf %6, %13 : vector<8x1024xf32>
    %15 = arith.mulf %14, %14 : vector<8x1024xf32>
    %cst_7 = arith.constant -1.125000e+02 : f32
    %16 = vector.broadcast %cst_7 : f32 to vector<8x1024xf32>
    %17 = arith.mulf %15, %16 : vector<8x1024xf32>
    %18 = math.exp %17 : vector<8x1024xf32>
    %c4_i32 = arith.constant 4 : i32
    %19 = arith.addi %0, %c4_i32 : i32
    %20 = arith.index_cast %19 : i32 to index
    %21 = memref.load %arg3[%20] : memref<124xf32, #tpu.memory_space<smem>>
    %22 = vector.broadcast %21 : f32 to vector<8x1024xf32>
    %23 = arith.mulf %22, %18 : vector<8x1024xf32>
    %24 = arith.mulf %18, %9 : vector<8x1024xf32>
    %c5_i32 = arith.constant 5 : i32
    %25 = arith.addi %0, %c5_i32 : i32
    %26 = arith.index_cast %25 : i32 to index
    %27 = memref.load %arg3[%26] : memref<124xf32, #tpu.memory_space<smem>>
    %28 = vector.broadcast %27 : f32 to vector<8x1024xf32>
    %29 = arith.mulf %28, %24 : vector<8x1024xf32>
    %30 = arith.addf %23, %29 : vector<8x1024xf32>
    %31 = arith.mulf %24, %9 : vector<8x1024xf32>
    %c6_i32 = arith.constant 6 : i32
    %32 = arith.addi %0, %c6_i32 : i32
    %33 = arith.index_cast %32 : i32 to index
    %34 = memref.load %arg3[%33] : memref<124xf32, #tpu.memory_space<smem>>
    %35 = vector.broadcast %34 : f32 to vector<8x1024xf32>
    %36 = arith.mulf %35, %31 : vector<8x1024xf32>
    %37 = arith.addf %30, %36 : vector<8x1024xf32>
    %38 = arith.mulf %31, %9 : vector<8x1024xf32>
    %c7_i32 = arith.constant 7 : i32
    %39 = arith.addi %0, %c7_i32 : i32
    %40 = arith.index_cast %39 : i32 to index
    %41 = memref.load %arg3[%40] : memref<124xf32, #tpu.memory_space<smem>>
    %42 = vector.broadcast %41 : f32 to vector<8x1024xf32>
    %43 = arith.mulf %42, %38 : vector<8x1024xf32>
    %44 = arith.addf %37, %43 : vector<8x1024xf32>
    %45 = arith.mulf %18, %12 : vector<8x1024xf32>
    %c3_i32 = arith.constant 3 : i32
    %46 = arith.addi %0, %c3_i32 : i32
    %47 = arith.index_cast %46 : i32 to index
    %48 = memref.load %arg3[%47] : memref<124xf32, #tpu.memory_space<smem>>
    %49 = vector.broadcast %48 : f32 to vector<8x1024xf32>
    %50 = arith.mulf %49, %45 : vector<8x1024xf32>
    %51 = arith.addf %44, %50 : vector<8x1024xf32>
    %52 = arith.mulf %45, %12 : vector<8x1024xf32>
    %c2_i32 = arith.constant 2 : i32
    %53 = arith.addi %0, %c2_i32 : i32
    %54 = arith.index_cast %53 : i32 to index
    %55 = memref.load %arg3[%54] : memref<124xf32, #tpu.memory_space<smem>>
    %56 = vector.broadcast %55 : f32 to vector<8x1024xf32>
    %57 = arith.mulf %56, %52 : vector<8x1024xf32>
    %58 = arith.addf %51, %57 : vector<8x1024xf32>
    %59 = arith.mulf %52, %12 : vector<8x1024xf32>
    %c1_i32 = arith.constant 1 : i32
    %60 = arith.addi %0, %c1_i32 : i32
    %61 = arith.index_cast %60 : i32 to index
    %62 = memref.load %arg3[%61] : memref<124xf32, #tpu.memory_space<smem>>
    %63 = vector.broadcast %62 : f32 to vector<8x1024xf32>
    %64 = arith.mulf %63, %59 : vector<8x1024xf32>
    %65 = arith.addf %58, %64 : vector<8x1024xf32>
    %66 = arith.mulf %59, %12 : vector<8x1024xf32>
    %c0_i32 = arith.constant 0 : i32
    %67 = arith.addi %0, %c0_i32 : i32
    %68 = arith.index_cast %67 : i32 to index
    %69 = memref.load %arg3[%68] : memref<124xf32, #tpu.memory_space<smem>>
    %70 = vector.broadcast %69 : f32 to vector<8x1024xf32>
    %71 = arith.mulf %70, %66 : vector<8x1024xf32>
    %72 = arith.addf %65, %71 : vector<8x1024xf32>
    %cst_8 = arith.constant -2.000000e-01 : f32
    %73 = vector.broadcast %cst_8 : f32 to vector<8x1024xf32>
    %74 = arith.subf %6, %73 : vector<8x1024xf32>
    %75 = arith.mulf %74, %74 : vector<8x1024xf32>
    %cst_9 = arith.constant -1.125000e+02 : f32
    %76 = vector.broadcast %cst_9 : f32 to vector<8x1024xf32>
    %77 = arith.mulf %75, %76 : vector<8x1024xf32>
    %78 = math.exp %77 : vector<8x1024xf32>
    %c12_i32 = arith.constant 12 : i32
    %79 = arith.addi %0, %c12_i32 : i32
    %80 = arith.index_cast %79 : i32 to index
    %81 = memref.load %arg3[%80] : memref<124xf32, #tpu.memory_space<smem>>
    %82 = vector.broadcast %81 : f32 to vector<8x1024xf32>
    %83 = arith.mulf %82, %78 : vector<8x1024xf32>
    %84 = arith.addf %72, %83 : vector<8x1024xf32>
    %85 = arith.mulf %78, %9 : vector<8x1024xf32>
    %c13_i32 = arith.constant 13 : i32
    %86 = arith.addi %0, %c13_i32 : i32
    %87 = arith.index_cast %86 : i32 to index
    %88 = memref.load %arg3[%87] : memref<124xf32, #tpu.memory_space<smem>>
    %89 = vector.broadcast %88 : f32 to vector<8x1024xf32>
    %90 = arith.mulf %89, %85 : vector<8x1024xf32>
    %91 = arith.addf %84, %90 : vector<8x1024xf32>
    %92 = arith.mulf %85, %9 : vector<8x1024xf32>
    %c14_i32 = arith.constant 14 : i32
    %93 = arith.addi %0, %c14_i32 : i32
    %94 = arith.index_cast %93 : i32 to index
    %95 = memref.load %arg3[%94] : memref<124xf32, #tpu.memory_space<smem>>
    %96 = vector.broadcast %95 : f32 to vector<8x1024xf32>
    %97 = arith.mulf %96, %92 : vector<8x1024xf32>
    %98 = arith.addf %91, %97 : vector<8x1024xf32>
    %99 = arith.mulf %92, %9 : vector<8x1024xf32>
    %c15_i32 = arith.constant 15 : i32
    %100 = arith.addi %0, %c15_i32 : i32
    %101 = arith.index_cast %100 : i32 to index
    %102 = memref.load %arg3[%101] : memref<124xf32, #tpu.memory_space<smem>>
    %103 = vector.broadcast %102 : f32 to vector<8x1024xf32>
    %104 = arith.mulf %103, %99 : vector<8x1024xf32>
    %105 = arith.addf %98, %104 : vector<8x1024xf32>
    %106 = arith.mulf %78, %12 : vector<8x1024xf32>
    %c11_i32 = arith.constant 11 : i32
    %107 = arith.addi %0, %c11_i32 : i32
    %108 = arith.index_cast %107 : i32 to index
    %109 = memref.load %arg3[%108] : memref<124xf32, #tpu.memory_space<smem>>
    %110 = vector.broadcast %109 : f32 to vector<8x1024xf32>
    %111 = arith.mulf %110, %106 : vector<8x1024xf32>
    %112 = arith.addf %105, %111 : vector<8x1024xf32>
    %113 = arith.mulf %106, %12 : vector<8x1024xf32>
    %c10_i32 = arith.constant 10 : i32
    %114 = arith.addi %0, %c10_i32 : i32
    %115 = arith.index_cast %114 : i32 to index
    %116 = memref.load %arg3[%115] : memref<124xf32, #tpu.memory_space<smem>>
    %117 = vector.broadcast %116 : f32 to vector<8x1024xf32>
    %118 = arith.mulf %117, %113 : vector<8x1024xf32>
    %119 = arith.addf %112, %118 : vector<8x1024xf32>
    %120 = arith.mulf %113, %12 : vector<8x1024xf32>
    %c9_i32 = arith.constant 9 : i32
    %121 = arith.addi %0, %c9_i32 : i32
    %122 = arith.index_cast %121 : i32 to index
    %123 = memref.load %arg3[%122] : memref<124xf32, #tpu.memory_space<smem>>
    %124 = vector.broadcast %123 : f32 to vector<8x1024xf32>
    %125 = arith.mulf %124, %120 : vector<8x1024xf32>
    %126 = arith.addf %119, %125 : vector<8x1024xf32>
    %127 = arith.mulf %120, %12 : vector<8x1024xf32>
    %c8_i32 = arith.constant 8 : i32
    %128 = arith.addi %0, %c8_i32 : i32
    %129 = arith.index_cast %128 : i32 to index
    %130 = memref.load %arg3[%129] : memref<124xf32, #tpu.memory_space<smem>>
    %131 = vector.broadcast %130 : f32 to vector<8x1024xf32>
    %132 = arith.mulf %131, %127 : vector<8x1024xf32>
    %133 = arith.addf %126, %132 : vector<8x1024xf32>
    %cst_10 = arith.constant 0.333333343 : f32
    %134 = vector.broadcast %cst_10 : f32 to vector<8x1024xf32>
    %135 = arith.subf %6, %134 : vector<8x1024xf32>
    %136 = arith.mulf %135, %135 : vector<8x1024xf32>
    %cst_11 = arith.constant -1.125000e+02 : f32
    %137 = vector.broadcast %cst_11 : f32 to vector<8x1024xf32>
    %138 = arith.mulf %136, %137 : vector<8x1024xf32>
    %139 = math.exp %138 : vector<8x1024xf32>
    %c20_i32 = arith.constant 20 : i32
    %140 = arith.addi %0, %c20_i32 : i32
    %141 = arith.index_cast %140 : i32 to index
    %142 = memref.load %arg3[%141] : memref<124xf32, #tpu.memory_space<smem>>
    %143 = vector.broadcast %142 : f32 to vector<8x1024xf32>
    %144 = arith.mulf %143, %139 : vector<8x1024xf32>
    %145 = arith.addf %133, %144 : vector<8x1024xf32>
    %146 = arith.mulf %139, %9 : vector<8x1024xf32>
    %c21_i32 = arith.constant 21 : i32
    %147 = arith.addi %0, %c21_i32 : i32
    %148 = arith.index_cast %147 : i32 to index
    %149 = memref.load %arg3[%148] : memref<124xf32, #tpu.memory_space<smem>>
    %150 = vector.broadcast %149 : f32 to vector<8x1024xf32>
    %151 = arith.mulf %150, %146 : vector<8x1024xf32>
    %152 = arith.addf %145, %151 : vector<8x1024xf32>
    %153 = arith.mulf %146, %9 : vector<8x1024xf32>
    %c22_i32 = arith.constant 22 : i32
    %154 = arith.addi %0, %c22_i32 : i32
    %155 = arith.index_cast %154 : i32 to index
    %156 = memref.load %arg3[%155] : memref<124xf32, #tpu.memory_space<smem>>
    %157 = vector.broadcast %156 : f32 to vector<8x1024xf32>
    %158 = arith.mulf %157, %153 : vector<8x1024xf32>
    %159 = arith.addf %152, %158 : vector<8x1024xf32>
    %160 = arith.mulf %153, %9 : vector<8x1024xf32>
    %c23_i32 = arith.constant 23 : i32
    %161 = arith.addi %0, %c23_i32 : i32
    %162 = arith.index_cast %161 : i32 to index
    %163 = memref.load %arg3[%162] : memref<124xf32, #tpu.memory_space<smem>>
    %164 = vector.broadcast %163 : f32 to vector<8x1024xf32>
    %165 = arith.mulf %164, %160 : vector<8x1024xf32>
    %166 = arith.addf %159, %165 : vector<8x1024xf32>
    %167 = arith.mulf %139, %12 : vector<8x1024xf32>
    %c19_i32 = arith.constant 19 : i32
    %168 = arith.addi %0, %c19_i32 : i32
    %169 = arith.index_cast %168 : i32 to index
    %170 = memref.load %arg3[%169] : memref<124xf32, #tpu.memory_space<smem>>
    %171 = vector.broadcast %170 : f32 to vector<8x1024xf32>
    %172 = arith.mulf %171, %167 : vector<8x1024xf32>
    %173 = arith.addf %166, %172 : vector<8x1024xf32>
    %174 = arith.mulf %167, %12 : vector<8x1024xf32>
    %c18_i32 = arith.constant 18 : i32
    %175 = arith.addi %0, %c18_i32 : i32
    %176 = arith.index_cast %175 : i32 to index
    %177 = memref.load %arg3[%176] : memref<124xf32, #tpu.memory_space<smem>>
    %178 = vector.broadcast %177 : f32 to vector<8x1024xf32>
    %179 = arith.mulf %178, %174 : vector<8x1024xf32>
    %180 = arith.addf %173, %179 : vector<8x1024xf32>
    %181 = arith.mulf %174, %12 : vector<8x1024xf32>
    %c17_i32 = arith.constant 17 : i32
    %182 = arith.addi %0, %c17_i32 : i32
    %183 = arith.index_cast %182 : i32 to index
    %184 = memref.load %arg3[%183] : memref<124xf32, #tpu.memory_space<smem>>
    %185 = vector.broadcast %184 : f32 to vector<8x1024xf32>
    %186 = arith.mulf %185, %181 : vector<8x1024xf32>
    %187 = arith.addf %180, %186 : vector<8x1024xf32>
    %188 = arith.mulf %181, %12 : vector<8x1024xf32>
    %c16_i32 = arith.constant 16 : i32
    %189 = arith.addi %0, %c16_i32 : i32
    %190 = arith.index_cast %189 : i32 to index
    %191 = memref.load %arg3[%190] : memref<124xf32, #tpu.memory_space<smem>>
    %192 = vector.broadcast %191 : f32 to vector<8x1024xf32>
    %193 = arith.mulf %192, %188 : vector<8x1024xf32>
    %194 = arith.addf %187, %193 : vector<8x1024xf32>
    %cst_12 = arith.constant 8.000000e-01 : f32
    %195 = vector.broadcast %cst_12 : f32 to vector<8x1024xf32>
    %196 = arith.subf %6, %195 : vector<8x1024xf32>
    %197 = arith.mulf %196, %196 : vector<8x1024xf32>
    %cst_13 = arith.constant -1.125000e+02 : f32
    %198 = vector.broadcast %cst_13 : f32 to vector<8x1024xf32>
    %199 = arith.mulf %197, %198 : vector<8x1024xf32>
    %200 = math.exp %199 : vector<8x1024xf32>
    %c27_i32 = arith.constant 27 : i32
    %201 = arith.addi %0, %c27_i32 : i32
    %202 = arith.index_cast %201 : i32 to index
    %203 = memref.load %arg3[%202] : memref<124xf32, #tpu.memory_space<smem>>
    %204 = vector.broadcast %203 : f32 to vector<8x1024xf32>
    %205 = arith.mulf %204, %200 : vector<8x1024xf32>
    %206 = arith.addf %194, %205 : vector<8x1024xf32>
    %207 = arith.mulf %200, %9 : vector<8x1024xf32>
    %c28_i32 = arith.constant 28 : i32
    %208 = arith.addi %0, %c28_i32 : i32
    %209 = arith.index_cast %208 : i32 to index
    %210 = memref.load %arg3[%209] : memref<124xf32, #tpu.memory_space<smem>>
    %211 = vector.broadcast %210 : f32 to vector<8x1024xf32>
    %212 = arith.mulf %211, %207 : vector<8x1024xf32>
    %213 = arith.addf %206, %212 : vector<8x1024xf32>
    %214 = arith.mulf %207, %9 : vector<8x1024xf32>
    %c29_i32 = arith.constant 29 : i32
    %215 = arith.addi %0, %c29_i32 : i32
    %216 = arith.index_cast %215 : i32 to index
    %217 = memref.load %arg3[%216] : memref<124xf32, #tpu.memory_space<smem>>
    %218 = vector.broadcast %217 : f32 to vector<8x1024xf32>
    %219 = arith.mulf %218, %214 : vector<8x1024xf32>
    %220 = arith.addf %213, %219 : vector<8x1024xf32>
    %221 = arith.mulf %214, %9 : vector<8x1024xf32>
    %c30_i32 = arith.constant 30 : i32
    %222 = arith.addi %0, %c30_i32 : i32
    %223 = arith.index_cast %222 : i32 to index
    %224 = memref.load %arg3[%223] : memref<124xf32, #tpu.memory_space<smem>>
    %225 = vector.broadcast %224 : f32 to vector<8x1024xf32>
    %226 = arith.mulf %225, %221 : vector<8x1024xf32>
    %227 = arith.addf %220, %226 : vector<8x1024xf32>
    %228 = arith.mulf %200, %12 : vector<8x1024xf32>
    %c26_i32 = arith.constant 26 : i32
    %229 = arith.addi %0, %c26_i32 : i32
    %230 = arith.index_cast %229 : i32 to index
    %231 = memref.load %arg3[%230] : memref<124xf32, #tpu.memory_space<smem>>
    %232 = vector.broadcast %231 : f32 to vector<8x1024xf32>
    %233 = arith.mulf %232, %228 : vector<8x1024xf32>
    %234 = arith.addf %227, %233 : vector<8x1024xf32>
    %235 = arith.mulf %228, %12 : vector<8x1024xf32>
    %c25_i32 = arith.constant 25 : i32
    %236 = arith.addi %0, %c25_i32 : i32
    %237 = arith.index_cast %236 : i32 to index
    %238 = memref.load %arg3[%237] : memref<124xf32, #tpu.memory_space<smem>>
    %239 = vector.broadcast %238 : f32 to vector<8x1024xf32>
    %240 = arith.mulf %239, %235 : vector<8x1024xf32>
    %241 = arith.addf %234, %240 : vector<8x1024xf32>
    %242 = arith.mulf %235, %12 : vector<8x1024xf32>
    %c24_i32 = arith.constant 24 : i32
    %243 = arith.addi %0, %c24_i32 : i32
    %244 = arith.index_cast %243 : i32 to index
    %245 = memref.load %arg3[%244] : memref<124xf32, #tpu.memory_space<smem>>
    %246 = vector.broadcast %245 : f32 to vector<8x1024xf32>
    %247 = arith.mulf %246, %242 : vector<8x1024xf32>
    %248 = arith.addf %241, %247 : vector<8x1024xf32>
    %c0_14 = arith.constant 0 : index
    %c0_15 = arith.constant 0 : index
    %c0_16 = arith.constant 0 : index
    %c0_17 = arith.constant 0 : index
    %249 = vector.load %arg5[%c0_14, %c0_15, %c0_16, %c0_17] : memref<1x1x8x1024xf32, #tpu.memory_space<vmem>>, vector<1x1x8x1024xf32>
    %250 = vector.shape_cast %249 : vector<1x1x8x1024xf32> to vector<8x1024xf32>
    %251 = vector.shape_cast %248 : vector<8x1024xf32> to vector<1x1x8x1024xf32>
    tpu.vector_store %arg5[%c0_14, %c0_15, %c0_16, %c0_17], %251 {strides = array<i32>} : memref<1x1x8x1024xf32, #tpu.memory_space<vmem>>, vector<1x1x8x1024xf32>,
    return
  }
  func.func @transform_0(%arg0: i32, %arg1: i32, %arg2: i32) -> i32 {
    %c0_i32 = arith.constant 0 : i32
    %c0_i32_0 = arith.constant 0 : i32
    return %c0_i32 : i32
  }
  func.func @transform_1(%arg0: i32, %arg1: i32, %arg2: i32) -> (i32, i32, i32, i32) {
    %c0_i32 = arith.constant 0 : i32
    %c0_i32_0 = arith.constant 0 : i32
    return %arg0, %arg1, %arg2, %c0_i32 : i32, i32, i32, i32
  }
  func.func @transform_2(%arg0: i32, %arg1: i32, %arg2: i32) -> (i32, i32, i32, i32) {
    %c0_i32 = arith.constant 0 : i32
    %c0_i32_0 = arith.constant 0 : i32
    return %arg0, %arg1, %arg2, %c0_i32 : i32, i32, i32, i32
  }
}

</mosaic_0001>

<llo_original>
// kernel: tpu_custom_call.1
$region0: #{tpu_custom_call.1}
  #allocation0 [shape = 'u32[]', space=smem, size = 0x4, offset = 0x4, fixed_abs, tag = 'smem constant byte address 0x4 - core index']
  #allocation1 [shape = 'u32[72,128]{1,0:T(1,128)}', space=vmem, size = 0x9000, scoped, tag = 'internal scratch']
  %s0 = inlined_call_operand.hbm [shape: f32[124], index: 0, kind: input, shape index: {}]
  %s1 = inlined_call_operand.hbm [shape: f32[2,4,8,1024], index: 1, kind: input, shape index: {}]
  %s2 = inlined_call_operand.hbm [shape: f32[2,4,8,1024], index: 2, kind: output, shape index: {}]
  %s3 = sld [smem:[#allocation0]]
  $region49: #{tpu_custom_call.1} parent=0
    _
  %s5 = ssub.s32 1, %s3
  %s6 = scalar_select 0, %s5, %s3
  $region1: #{tpu_custom_call.1} parent=0
    #allocation2 [shape = 'u8[512]{0}', space=smem, size = 0x200, scoped, tag = 'input window, operand 0, single buffered']
    #allocation3 [shape = 's32[2]{0}', space=sflag, size = 0x8, scoped, tag = 'scoped memory for tpu_custom_call.1']
    #allocation4 [shape = 's32[2]{0}', space=sflag, size = 0x8, scoped, tag = 'scoped memory for tpu_custom_call.1']
    #allocation5 [shape = 's32[2]{0}', space=sflag, size = 0x8, scoped, tag = 'scoped memory for tpu_custom_call.1']
    #allocation6 [shape = 'u8[65536]{0}', space=vmem, size = 0x10000, scoped, tag = 'input window, operand 1']
    #allocation7 [shape = 'u8[65536]{0}', space=vmem, size = 0x10000, scoped, tag = 'output window, operand 0']
    %7 = vsyncpa [#allocation5], 0
    %8 = vsyncpa [#allocation3], 0
    %s9 = scalar_lea.sflag [#allocation3], 1
    %10 = vsyncpa %s9, 0
    %11 = vsyncpa [#allocation4], 0
    %s12 = scalar_lea.sflag [#allocation4], 1
    %13 = vsyncpa %s12, 0
    loop: start=0, step=1, limit=10
    $region2: #{tpu_custom_call.1} parent=1 // loop_pre_header
      _
    $region3: #{tpu_custom_call.1} parent=1 // loop_header
      %s15 = sphi 0, %s19
      %p16 = scmp.ge.s32.totalorder %s15, 10
      %s22 = sphi 0, %s41
      %s23 = sphi 0, %s37
      %s24 = sphi 0, %s33
      %s25 = sphi 0, %s22
      %s26 = sphi 0, %s23
      %s27 = sphi 0, %s24
      %s28 = sphi 0, %s25
      %s29 = sphi 0, %s26
      %s30 = sphi 0, %s27
      %s42 = sphi 0, %s42
      %s44 = sphi 0, %s42
      %s45 = sphi 0, %s44
      %s59 = sphi 0, %s45
      %s69 = sphi 0, %s71
      %s72 = sphi 0, %s69
      %s73 = sphi 0, %s72
      %s89 = sphi 0, %s73
      %s99 = sphi 0, %s101
      %s102 = sphi 0, %s99
      %s103 = sphi 0, %s102
      %s119 = sphi 0, %s103
    $region4: #{tpu_custom_call.1} parent=1 // loop_header_branch
      %18 = sbr.rel (%p16) target = $region8
    $region5: #{tpu_custom_call.1} parent=1 // loop_body
      %s20 = ssub.s32 %s15, 1
      %s21 = ssub.s32 %s15, 2
      %s31 = sadd.s32 1, %s24
      %p32 = scmp.ge.s32.totalorder %s31, 1
      %s33 = scalar_select %p32, 0, %s31
      %s34 = sadd.s32 1, %s23
      %s35 = scalar_select %p32, %s34, %s23
      %p36 = scmp.ge.s32.totalorder %s35, 4
      %s37 = scalar_select %p36, 0, %s35
      %s38 = sadd.s32 1, %s22
      %s39 = scalar_select %p36, %s38, %s22
      %p40 = scmp.ge.s32.totalorder %s39, 2
      %s41 = scalar_select %p40, 0, %s39
      %s43 = sadd.s32 %s42, 1
      %p46 = scmp.eq.s32.totalorder %s15, 7
      %p47 = scmp.ne.s32.totalorder %s42, %s44
      %p48 = scmp.eq.s32.totalorder %s15, 0
      %p49 = por %p47, %p48
      %p50 = scmp.ne.s32.totalorder %s42, %s44
      %p51 = scmp.eq.s32.totalorder %s20, 7
      %p52 = por %p50, %p51
      %p53 = scmp.ne.s32.totalorder %s44, %s45
      %p54 = scmp.eq.s32.totalorder %s20, 0
      %p55 = por %p53, %p54
      %p56 = scmp.ne.s32.totalorder %s44, %s45
      %p57 = scmp.eq.s32.totalorder %s21, 7
      %p58 = por %p56, %p57
      %p60 = scmp.ne.s32.totalorder %s45, %s59
      %p61 = scmp.eq.s32.totalorder %s21, 0
      %p62 = por %p60, %p61
      %s63 = ssub.s32 %s22, %s41
      %s64 = ssub.s32 %s23, %s37
      %s65 = sor.u32 %s63, %s64
      %s66 = ssub.s32 %s24, %s33
      %s67 = sor.u32 %s65, %s66
      %p68 = scmp.eq.s32.totalorder %s67, 0
      %s70 = sadd.s32 %s69, 1
      %s71 = scalar_select %p68, %s69, %s70
      %p74 = pneg %p68
      %p75 = scmp.eq.s32.totalorder %s15, 7
      %p76 = por %p74, %p75
      %p77 = scmp.ne.s32.totalorder %s69, %s72
      %p78 = scmp.eq.s32.totalorder %s15, 0
      %p79 = por %p77, %p78
      %p80 = scmp.ne.s32.totalorder %s69, %s72
      %p81 = scmp.eq.s32.totalorder %s20, 7
      %p82 = por %p80, %p81
      %p83 = scmp.ne.s32.totalorder %s72, %s73
      %p84 = scmp.eq.s32.totalorder %s20, 0
      %p85 = por %p83, %p84
      %p86 = scmp.ne.s32.totalorder %s72, %s73
      %p87 = scmp.eq.s32.totalorder %s21, 7
      %p88 = por %p86, %p87
      %p90 = scmp.ne.s32.totalorder %s73, %s89
      %p91 = scmp.eq.s32.totalorder %s21, 0
      %p92 = por %p90, %p91
      %s93 = ssub.s32 %s22, %s41
      %s94 = ssub.s32 %s23, %s37
      %s95 = sor.u32 %s93, %s94
      %s96 = ssub.s32 %s24, %s33
      %s97 = sor.u32 %s95, %s96
      %p98 = scmp.eq.s32.totalorder %s97, 0
      %s100 = sadd.s32 %s99, 1
      %s101 = scalar_select %p98, %s99, %s100
      %p104 = pneg %p98
      %p105 = scmp.eq.s32.totalorder %s15, 7
      %p106 = por %p104, %p105
      %p107 = scmp.ne.s32.totalorder %s99, %s102
      %p108 = scmp.eq.s32.totalorder %s15, 0
      %p109 = por %p107, %p108
      %p110 = scmp.ne.s32.totalorder %s99, %s102
      %p111 = scmp.eq.s32.totalorder %s20, 7
      %p112 = por %p110, %p111
      %p113 = scmp.ne.s32.totalorder %s102, %s103
      %p114 = scmp.eq.s32.totalorder %s20, 0
      %p115 = por %p113, %p114
      %p116 = scmp.ne.s32.totalorder %s102, %s103
      %p117 = scmp.eq.s32.totalorder %s21, 7
      %p118 = por %p116, %p117
      %p120 = scmp.ne.s32.totalorder %s103, %s119
      %p121 = scmp.eq.s32.totalorder %s21, 0
      %p122 = por %p120, %p121
      %p123 = scmp.le.s32.totalorder 1, %s15
      %p124 = scmp.lt.s32.totalorder %s15, 9
      %p125 = pnand %p123, %p124
      %p126 = pneg %p125
      // Predicated region
      $region9: #{tpu_custom_call.1} parent=5 // pred_check
        _
      $region10: #{tpu_custom_call.1} parent=5 // pred_check_branch
        %128 = sbr.rel (%p125) target = $region12
      $region11: #{tpu_custom_call.1} parent=5 // pred_region
        %s129 = ssub.s32 %s15, 1
        // Predicated region
        $region13: #{tpu_custom_call.1} parent=11 // pred_check
          %p130 = pneg %p55
        $region14: #{tpu_custom_call.1} parent=11 // pred_check_branch
          %132 = sbr.rel (%p130) target = $region16
        $region15: #{tpu_custom_call.1} parent=11 // pred_region
          %134 = vsyncadd [#allocation5], 0
          %s136 = sshll.u32 %s0, 4
          %s137 = int_to_ptr.hbm [resolvable:$true] %s136
          %139 = dma.hbm_to_smem %s137, 16, [#allocation2], [#allocation5]
        $region16: #{tpu_custom_call.1} parent=11 // pred_fallthru
          _
      $region12: #{tpu_custom_call.1} parent=5 // pred_fallthru
        _
      %p140 = scmp.lt.s32.totalorder %s15, 8
      // Predicated region
      $region17: #{tpu_custom_call.1} parent=5 // pred_check
        %p141 = pneg %p140
      $region18: #{tpu_custom_call.1} parent=5 // pred_check_branch
        %143 = sbr.rel (%p141) target = $region20
      $region19: #{tpu_custom_call.1} parent=5 // pred_region
        // Predicated region
        $region21: #{tpu_custom_call.1} parent=19 // pred_check
          %p144 = pneg %p79
        $region22: #{tpu_custom_call.1} parent=19 // pred_check_branch
          %146 = sbr.rel (%p144) target = $region24
        $region23: #{tpu_custom_call.1} parent=19 // pred_region
          %s147 = sand.u32 %s69, 1
          %s148 = scalar_lea.sflag [#allocation3], %s147
          %s149 = sand.u32 %s69, 1
          %s150 = smul.addr %s149, 64
          %s151 = scalar_lea.vmem [#allocation6], %s150
          %153 = vsyncadd %s148, 0
          %s154 = smul.addr %s24, 8
          %s155 = smul.addr %s23, 8
          %s156 = sadd.s32 %s154, %s155
          %s157 = smul.addr %s22, 32
          %s158 = sadd.s32 %s156, %s157
          %s159 = smul.addr %s158, 8
          %s160 = scalar_lea.hbm %s1, %s159
          %s162 = sshll.u32 %s160, 4
          %s163 = int_to_ptr.hbm [resolvable:$true] %s162
          %s164 = sshll.u32 %s151, 4
          %s165 = int_to_ptr.vmem [resolvable:$true] %s164
          %167 = dma.hbm_to_vmem [thread:$0]  %s163, 1024, %s165, %s148
        $region24: #{tpu_custom_call.1} parent=19 // pred_fallthru
          _
      $region20: #{tpu_custom_call.1} parent=5 // pred_fallthru
        _
      %p168 = scmp.le.s32.totalorder 1, %s15
      %p169 = scmp.lt.s32.totalorder %s15, 9
      %p170 = pnand %p168, %p169
      %p171 = pneg %p170
      // Predicated region
      $region25: #{tpu_custom_call.1} parent=5 // pred_check
        _
      $region26: #{tpu_custom_call.1} parent=5 // pred_check_branch
        %173 = sbr.rel (%p170) target = $region28
      $region27: #{tpu_custom_call.1} parent=5 // pred_region
        %s174 = ssub.s32 %s15, 1
        // Predicated region
        $region29: #{tpu_custom_call.1} parent=27 // pred_check
          %p175 = pneg %p55
        $region30: #{tpu_custom_call.1} parent=27 // pred_check_branch
          %177 = sbr.rel (%p175) target = $region32
        $region31: #{tpu_custom_call.1} parent=27 // pred_region
          %179 = dma.done [#allocation5], 16
        $region32: #{tpu_custom_call.1} parent=27 // pred_fallthru
          _
        %s180 = sand.u32 %s72, 1
        %s181 = scalar_lea.sflag [#allocation3], %s180
        %s182 = sand.u32 %s72, 1
        %s183 = smul.addr %s182, 64
        %s184 = scalar_lea.vmem [#allocation6], %s183
        // Predicated region
        $region33: #{tpu_custom_call.1} parent=27 // pred_check
          %p185 = pneg %p85
        $region34: #{tpu_custom_call.1} parent=27 // pred_check_branch
          %187 = sbr.rel (%p185) target = $region36
        $region35: #{tpu_custom_call.1} parent=27 // pred_region
          %189 = dma.done %s181, 1024
        $region36: #{tpu_custom_call.1} parent=27 // pred_fallthru
          _
        %190 = sfence
        %p191 = pneg %p55
        %p192 = pneg %p52
        %s193 = sand.u32 %s72, 1
        %s194 = scalar_lea.sflag [#allocation3], %s193
        %s195 = sand.u32 %s72, 1
        %s196 = smul.addr %s195, 64
        %s197 = scalar_lea.vmem [#allocation6], %s196
        %p198 = pneg %p85
        %p199 = pneg %p82
        %p200 = pneg %p115
        %p201 = pneg %p112
        %s202 = sand.u32 %s102, 1
        %s203 = scalar_lea.sflag [#allocation4], %s202
        %s204 = sand.u32 %s102, 1
        %s205 = smul.addr %s204, 64
        %s206 = scalar_lea.vmem [#allocation7], %s205
        %s207 = smul.u32 %s26, 31
        %v208 = vld [vmem:[%s184] sm:$0xff]
        %v209 = vld [vmem:[%s184 + $0x8] sm:$0xff]
        %v210 = vld [vmem:[%s184 + $0x10] sm:$0xff]
        %v211 = vld [vmem:[%s184 + $0x18] sm:$0xff]
        %v212 = vld [vmem:[%s184 + $0x20] sm:$0xff]
        %v213 = vld [vmem:[%s184 + $0x28] sm:$0xff]
        %v214 = vld [vmem:[%s184 + $0x30] sm:$0xff]
        %v215 = vld [vmem:[%s184 + $0x38] sm:$0xff]
        %v216 = vmax.f32 %v208, -2.0
        %v217 = vmax.f32 %v209, -2.0
        %v218 = vmax.f32 %v210, -2.0
        %v219 = vmax.f32 %v211, -2.0
        %v220 = vmax.f32 %v212, -2.0
        %v221 = vmax.f32 %v213, -2.0
        %v222 = vmax.f32 %v214, -2.0
        %v223 = vmax.f32 %v215, -2.0
        %v224 = vmin.f32 %v216, 2.0
        %v225 = vmin.f32 %v217, 2.0
        %v226 = vmin.f32 %v218, 2.0
        %v227 = vmin.f32 %v219, 2.0
        %v228 = vmin.f32 %v220, 2.0
        %v229 = vmin.f32 %v221, 2.0
        %v230 = vmin.f32 %v222, 2.0
        %v231 = vmin.f32 %v223, 2.0
        %v232 = vmul.f32 %v224, 14.999999
        %v233 = vmul.f32 %v225, 14.999999
        %v234 = vmul.f32 %v226, 14.999999
        %v235 = vmul.f32 %v227, 14.999999
        %v236 = vmul.f32 %v228, 14.999999
        %v237 = vmul.f32 %v229, 14.999999
        %v238 = vmul.f32 %v230, 14.999999
        %v239 = vmul.f32 %v231, 14.999999
        %v240 = vmul.f32 %v232, 1.442695
        %v241 = vpow.pop %v240
        %v242 = vmul.f32 %v233, 1.442695
        %v243 = vpow.pop %v242
        %v244 = vmul.f32 %v234, 1.442695
        %v245 = vpow.pop %v244
        %v246 = vmul.f32 %v235, 1.442695
        %v247 = vpow.pop %v246
        %v248 = vmul.f32 %v236, 1.442695
        %v249 = vpow.pop %v248
        %v250 = vmul.f32 %v237, 1.442695
        %v251 = vpow.pop %v250
        %v252 = vmul.f32 %v238, 1.442695
        %v253 = vpow.pop %v252
        %v254 = vmul.f32 %v239, 1.442695
        %v255 = vpow.pop %v254
        %v256 = vsub.f32 0.0, %v232
        %v257 = vsub.f32 0.0, %v233
        %v258 = vsub.f32 0.0, %v234
        %v259 = vsub.f32 0.0, %v235
        %v260 = vsub.f32 0.0, %v236
        %v261 = vsub.f32 0.0, %v237
        %v262 = vsub.f32 0.0, %v238
        %v263 = vsub.f32 0.0, %v239
        %v264 = vmul.f32 %v256, 1.442695
        %v265 = vpow.pop %v264
        %v266 = vmul.f32 %v257, 1.442695
        %v267 = vpow.pop %v266
        %v268 = vmul.f32 %v258, 1.442695
        %v269 = vpow.pop %v268
        %v270 = vmul.f32 %v259, 1.442695
        %v271 = vpow.pop %v270
        %v272 = vmul.f32 %v260, 1.442695
        %v273 = vpow.pop %v272
        %v274 = vmul.f32 %v261, 1.442695
        %v275 = vpow.pop %v274
        %v276 = vmul.f32 %v262, 1.442695
        %v277 = vpow.pop %v276
        %v278 = vmul.f32 %v263, 1.442695
        %v279 = vpow.pop %v278
        %v280 = vsub.f32 %v224, -0.73333335
        %v281 = vsub.f32 %v225, -0.73333335
        %v282 = vsub.f32 %v226, -0.73333335
        %v283 = vsub.f32 %v227, -0.73333335
        %v284 = vsub.f32 %v228, -0.73333335
        %v285 = vsub.f32 %v229, -0.73333335
        %v286 = vsub.f32 %v230, -0.73333335
        %v287 = vsub.f32 %v231, -0.73333335
        %v288 = vmul.f32 %v280, %v280
        %v289 = vmul.f32 %v281, %v281
        %v290 = vmul.f32 %v282, %v282
        %v291 = vmul.f32 %v283, %v283
        %v292 = vmul.f32 %v284, %v284
        %v293 = vmul.f32 %v285, %v285
        %v294 = vmul.f32 %v286, %v286
        %v295 = vmul.f32 %v287, %v287
        %v296 = vmul.f32 %v288, -112.5
        %v297 = vmul.f32 %v289, -112.5
        %v298 = vmul.f32 %v290, -112.5
        %v299 = vmul.f32 %v291, -112.5
        %v300 = vmul.f32 %v292, -112.5
        %v301 = vmul.f32 %v293, -112.5
        %v302 = vmul.f32 %v294, -112.5
        %v303 = vmul.f32 %v295, -112.5
        %v304 = vmul.f32 %v296, 1.442695
        %v305 = vpow.pop %v304
        %v306 = vmul.f32 %v297, 1.442695
        %v307 = vpow.pop %v306
        %v308 = vmul.f32 %v298, 1.442695
        %v309 = vpow.pop %v308
        %v310 = vmul.f32 %v299, 1.442695
        %v311 = vpow.pop %v310
        %v312 = vmul.f32 %v300, 1.442695
        %v313 = vpow.pop %v312
        %v314 = vmul.f32 %v301, 1.442695
        %v315 = vpow.pop %v314
        %v316 = vmul.f32 %v302, 1.442695
        %v317 = vpow.pop %v316
        %v318 = vmul.f32 %v303, 1.442695
        %v319 = vpow.pop %v318
        %s320 = sadd.s32 %s207, 4
        %s321 = sld [smem:[#allocation2 + %s320]]
        %v322 = vstv %s321
        %v323 = vmul.f32 %v322, %v305
        %v324 = vmul.f32 %v322, %v307
        %v325 = vmul.f32 %v322, %v309
        %v326 = vmul.f32 %v322, %v311
        %v327 = vmul.f32 %v322, %v313
        %v328 = vmul.f32 %v322, %v315
        %v329 = vmul.f32 %v322, %v317
        %v330 = vmul.f32 %v322, %v319
        %v331 = vmul.f32 %v305, %v241
        %v332 = vmul.f32 %v307, %v243
        %v333 = vmul.f32 %v309, %v245
        %v334 = vmul.f32 %v311, %v247
        %v335 = vmul.f32 %v313, %v249
        %v336 = vmul.f32 %v315, %v251
        %v337 = vmul.f32 %v317, %v253
        %v338 = vmul.f32 %v319, %v255
        %s339 = sadd.s32 %s207, 5
        %s340 = sld [smem:[#allocation2 + %s339]]
        %v341 = vstv %s340
        %v342 = vmul.f32 %v341, %v331
        %v343 = vmul.f32 %v341, %v332
        %v344 = vmul.f32 %v341, %v333
        %v345 = vmul.f32 %v341, %v334
        %v346 = vmul.f32 %v341, %v335
        %v347 = vmul.f32 %v341, %v336
        %v348 = vmul.f32 %v341, %v337
        %v349 = vmul.f32 %v341, %v338
        %v350 = vadd.f32 %v323, %v342
        %v351 = vadd.f32 %v324, %v343
        %v352 = vadd.f32 %v325, %v344
        %v353 = vadd.f32 %v326, %v345
        %v354 = vadd.f32 %v327, %v346
        %v355 = vadd.f32 %v328, %v347
        %v356 = vadd.f32 %v329, %v348
        %v357 = vadd.f32 %v330, %v349
        %v358 = vmul.f32 %v331, %v241
        %v359 = vmul.f32 %v332, %v243
        %v360 = vmul.f32 %v333, %v245
        %v361 = vmul.f32 %v334, %v247
        %v362 = vmul.f32 %v335, %v249
        %v363 = vmul.f32 %v336, %v251
        %v364 = vmul.f32 %v337, %v253
        %v365 = vmul.f32 %v338, %v255
        %s366 = sadd.s32 %s207, 6
        %s367 = sld [smem:[#allocation2 + %s366]]
        %v368 = vstv %s367
        %v369 = vmul.f32 %v368, %v358
        %v370 = vmul.f32 %v368, %v359
        %v371 = vmul.f32 %v368, %v360
        %v372 = vmul.f32 %v368, %v361
        %v373 = vmul.f32 %v368, %v362
        %v374 = vmul.f32 %v368, %v363
        %v375 = vmul.f32 %v368, %v364
        %v376 = vmul.f32 %v368, %v365
        %v377 = vadd.f32 %v350, %v369
        %v378 = vadd.f32 %v351, %v370
        %v379 = vadd.f32 %v352, %v371
        %v380 = vadd.f32 %v353, %v372
        %v381 = vadd.f32 %v354, %v373
        %v382 = vadd.f32 %v355, %v374
        %v383 = vadd.f32 %v356, %v375
        %v384 = vadd.f32 %v357, %v376
        %v385 = vmul.f32 %v358, %v241
        %v386 = vmul.f32 %v359, %v243
        %v387 = vmul.f32 %v360, %v245
        %v388 = vmul.f32 %v361, %v247
        %v389 = vmul.f32 %v362, %v249
        %v390 = vmul.f32 %v363, %v251
        %v391 = vmul.f32 %v364, %v253
        %v392 = vmul.f32 %v365, %v255
        %s393 = sadd.s32 %s207, 7
        %s394 = sld [smem:[#allocation2 + %s393]]
        %v395 = vstv %s394
        %v396 = vmul.f32 %v395, %v385
        %v397 = vmul.f32 %v395, %v386
        %v398 = vmul.f32 %v395, %v387
        %v399 = vmul.f32 %v395, %v388
        %v400 = vmul.f32 %v395, %v389
        %v401 = vmul.f32 %v395, %v390
        %v402 = vmul.f32 %v395, %v391
        %v403 = vmul.f32 %v395, %v392
        %v404 = vadd.f32 %v377, %v396
        %v405 = vadd.f32 %v378, %v397
        %v406 = vadd.f32 %v379, %v398
        %v407 = vadd.f32 %v380, %v399
        %v408 = vadd.f32 %v381, %v400
        %v409 = vadd.f32 %v382, %v401
        %v410 = vadd.f32 %v383, %v402
        %v411 = vadd.f32 %v384, %v403
        %v412 = vmul.f32 %v305, %v265
        %v413 = vmul.f32 %v307, %v267
        %v414 = vmul.f32 %v309, %v269
        %v415 = vmul.f32 %v311, %v271
        %v416 = vmul.f32 %v313, %v273
        %v417 = vmul.f32 %v315, %v275
        %v418 = vmul.f32 %v317, %v277
        %v419 = vmul.f32 %v319, %v279
        %s420 = sadd.s32 %s207, 3
        %s421 = sld [smem:[#allocation2 + %s420]]
        %v422 = vstv %s421
        %v423 = vmul.f32 %v422, %v412
        %v424 = vmul.f32 %v422, %v413
        %v425 = vmul.f32 %v422, %v414
        %v426 = vmul.f32 %v422, %v415
        %v427 = vmul.f32 %v422, %v416
        %v428 = vmul.f32 %v422, %v417
        %v429 = vmul.f32 %v422, %v418
        %v430 = vmul.f32 %v422, %v419
        %v431 = vadd.f32 %v404, %v423
        %v432 = vadd.f32 %v405, %v424
        %v433 = vadd.f32 %v406, %v425
        %v434 = vadd.f32 %v407, %v426
        %v435 = vadd.f32 %v408, %v427
        %v436 = vadd.f32 %v409, %v428
        %v437 = vadd.f32 %v410, %v429
        %v438 = vadd.f32 %v411, %v430
        %v439 = vmul.f32 %v412, %v265
        %v440 = vmul.f32 %v413, %v267
        %v441 = vmul.f32 %v414, %v269
        %v442 = vmul.f32 %v415, %v271
        %v443 = vmul.f32 %v416, %v273
        %v444 = vmul.f32 %v417, %v275
        %v445 = vmul.f32 %v418, %v277
        %v446 = vmul.f32 %v419, %v279
        %s447 = sadd.s32 %s207, 2
        %s448 = sld [smem:[#allocation2 + %s447]]
        %v449 = vstv %s448
        %v450 = vmul.f32 %v449, %v439
        %v451 = vmul.f32 %v449, %v440
        %v452 = vmul.f32 %v449, %v441
        %v453 = vmul.f32 %v449, %v442
        %v454 = vmul.f32 %v449, %v443
        %v455 = vmul.f32 %v449, %v444
        %v456 = vmul.f32 %v449, %v445
        %v457 = vmul.f32 %v449, %v446
        %v458 = vadd.f32 %v431, %v450
        %v459 = vadd.f32 %v432, %v451
        %v460 = vadd.f32 %v433, %v452
        %v461 = vadd.f32 %v434, %v453
        %v462 = vadd.f32 %v435, %v454
        %v463 = vadd.f32 %v436, %v455
        %v464 = vadd.f32 %v437, %v456
        %v465 = vadd.f32 %v438, %v457
        %v466 = vmul.f32 %v439, %v265
        %v467 = vmul.f32 %v440, %v267
        %v468 = vmul.f32 %v441, %v269
        %v469 = vmul.f32 %v442, %v271
        %v470 = vmul.f32 %v443, %v273
        %v471 = vmul.f32 %v444, %v275
        %v472 = vmul.f32 %v445, %v277
        %v473 = vmul.f32 %v446, %v279
        %s474 = sadd.s32 %s207, 1
        %s475 = sld [smem:[#allocation2 + %s474]]
        %v476 = vstv %s475
        %v477 = vmul.f32 %v476, %v466
        %v478 = vmul.f32 %v476, %v467
        %v479 = vmul.f32 %v476, %v468
        %v480 = vmul.f32 %v476, %v469
        %v481 = vmul.f32 %v476, %v470
        %v482 = vmul.f32 %v476, %v471
        %v483 = vmul.f32 %v476, %v472
        %v484 = vmul.f32 %v476, %v473
        %v485 = vadd.f32 %v458, %v477
        %v486 = vadd.f32 %v459, %v478
        %v487 = vadd.f32 %v460, %v479
        %v488 = vadd.f32 %v461, %v480
        %v489 = vadd.f32 %v462, %v481
        %v490 = vadd.f32 %v463, %v482
        %v491 = vadd.f32 %v464, %v483
        %v492 = vadd.f32 %v465, %v484
        %v493 = vmul.f32 %v466, %v265
        %v494 = vmul.f32 %v467, %v267
        %v495 = vmul.f32 %v468, %v269
        %v496 = vmul.f32 %v469, %v271
        %v497 = vmul.f32 %v470, %v273
        %v498 = vmul.f32 %v471, %v275
        %v499 = vmul.f32 %v472, %v277
        %v500 = vmul.f32 %v473, %v279
        %s501 = sld [smem:[#allocation2 + %s207]]
        %v502 = vstv %s501
        %v503 = vmul.f32 %v502, %v493
        %v504 = vmul.f32 %v502, %v494
        %v505 = vmul.f32 %v502, %v495
        %v506 = vmul.f32 %v502, %v496
        %v507 = vmul.f32 %v502, %v497
        %v508 = vmul.f32 %v502, %v498
        %v509 = vmul.f32 %v502, %v499
        %v510 = vmul.f32 %v502, %v500
        %v511 = vadd.f32 %v485, %v503
        %v512 = vadd.f32 %v486, %v504
        %v513 = vadd.f32 %v487, %v505
        %v514 = vadd.f32 %v488, %v506
        %v515 = vadd.f32 %v489, %v507
        %v516 = vadd.f32 %v490, %v508
        %v517 = vadd.f32 %v491, %v509
        %v518 = vadd.f32 %v492, %v510
        %v519 = vsub.f32 %v224, -0.2
        %v520 = vsub.f32 %v225, -0.2
        %v521 = vsub.f32 %v226, -0.2
        %v522 = vsub.f32 %v227, -0.2
        %v523 = vsub.f32 %v228, -0.2
        %v524 = vsub.f32 %v229, -0.2
        %v525 = vsub.f32 %v230, -0.2
        %v526 = vsub.f32 %v231, -0.2
        %v527 = vmul.f32 %v519, %v519
        %v528 = vmul.f32 %v520, %v520
        %v529 = vmul.f32 %v521, %v521
        %v530 = vmul.f32 %v522, %v522
        %v531 = vmul.f32 %v523, %v523
        %v532 = vmul.f32 %v524, %v524
        %v533 = vmul.f32 %v525, %v525
        %v534 = vmul.f32 %v526, %v526
        %v535 = vmul.f32 %v527, -112.5
        %v536 = vmul.f32 %v528, -112.5
        %v537 = vmul.f32 %v529, -112.5
        %v538 = vmul.f32 %v530, -112.5
        %v539 = vmul.f32 %v531, -112.5
        %v540 = vmul.f32 %v532, -112.5
        %v541 = vmul.f32 %v533, -112.5
        %v542 = vmul.f32 %v534, -112.5
        %v543 = vmul.f32 %v535, 1.442695
        %v544 = vpow.pop %v543
        %v545 = vmul.f32 %v536, 1.442695
        %v546 = vpow.pop %v545
        %v547 = vmul.f32 %v537, 1.442695
        %v548 = vpow.pop %v547
        %v549 = vmul.f32 %v538, 1.442695
        %v550 = vpow.pop %v549
        %v551 = vmul.f32 %v539, 1.442695
        %v552 = vpow.pop %v551
        %v553 = vmul.f32 %v540, 1.442695
        %v554 = vpow.pop %v553
        %v555 = vmul.f32 %v541, 1.442695
        %v556 = vpow.pop %v555
        %v557 = vmul.f32 %v542, 1.442695
        %v558 = vpow.pop %v557
        %s559 = sadd.s32 %s207, 12
        %s560 = sld [smem:[#allocation2 + %s559]]
        %v561 = vstv %s560
        %v562 = vmul.f32 %v561, %v544
        %v563 = vmul.f32 %v561, %v546
        %v564 = vmul.f32 %v561, %v548
        %v565 = vmul.f32 %v561, %v550
        %v566 = vmul.f32 %v561, %v552
        %v567 = vmul.f32 %v561, %v554
        %v568 = vmul.f32 %v561, %v556
        %v569 = vmul.f32 %v561, %v558
        %v570 = vadd.f32 %v511, %v562
        %v571 = vadd.f32 %v512, %v563
        %v572 = vadd.f32 %v513, %v564
        %v573 = vadd.f32 %v514, %v565
        %v574 = vadd.f32 %v515, %v566
        %v575 = vadd.f32 %v516, %v567
        %v576 = vadd.f32 %v517, %v568
        %v577 = vadd.f32 %v518, %v569
        %v578 = vmul.f32 %v544, %v241
        %v579 = vmul.f32 %v546, %v243
        %v580 = vmul.f32 %v548, %v245
        %v581 = vmul.f32 %v550, %v247
        %v582 = vmul.f32 %v552, %v249
        %v583 = vmul.f32 %v554, %v251
        %v584 = vmul.f32 %v556, %v253
        %v585 = vmul.f32 %v558, %v255
        %s586 = sadd.s32 %s207, 13
        %s587 = sld [smem:[#allocation2 + %s586]]
        %v588 = vstv %s587
        %v589 = vmul.f32 %v588, %v578
        %v590 = vmul.f32 %v588, %v579
        %v591 = vmul.f32 %v588, %v580
        %v592 = vmul.f32 %v588, %v581
        %v593 = vmul.f32 %v588, %v582
        %v594 = vmul.f32 %v588, %v583
        %v595 = vmul.f32 %v588, %v584
        %v596 = vmul.f32 %v588, %v585
        %v597 = vadd.f32 %v570, %v589
        %v598 = vadd.f32 %v571, %v590
        %v599 = vadd.f32 %v572, %v591
        %v600 = vadd.f32 %v573, %v592
        %v601 = vadd.f32 %v574, %v593
        %v602 = vadd.f32 %v575, %v594
        %v603 = vadd.f32 %v576, %v595
        %v604 = vadd.f32 %v577, %v596
        %v605 = vmul.f32 %v578, %v241
        %v606 = vmul.f32 %v579, %v243
        %v607 = vmul.f32 %v580, %v245
        %v608 = vmul.f32 %v581, %v247
        %v609 = vmul.f32 %v582, %v249
        %v610 = vmul.f32 %v583, %v251
        %v611 = vmul.f32 %v584, %v253
        %v612 = vmul.f32 %v585, %v255
        %s613 = sadd.s32 %s207, 14
        %s614 = sld [smem:[#allocation2 + %s613]]
        %v615 = vstv %s614
        %v616 = vmul.f32 %v615, %v605
        %v617 = vmul.f32 %v615, %v606
        %v618 = vmul.f32 %v615, %v607
        %v619 = vmul.f32 %v615, %v608
        %v620 = vmul.f32 %v615, %v609
        %v621 = vmul.f32 %v615, %v610
        %v622 = vmul.f32 %v615, %v611
        %v623 = vmul.f32 %v615, %v612
        %v624 = vadd.f32 %v597, %v616
        %v625 = vadd.f32 %v598, %v617
        %v626 = vadd.f32 %v599, %v618
        %v627 = vadd.f32 %v600, %v619
        %v628 = vadd.f32 %v601, %v620
        %v629 = vadd.f32 %v602, %v621
        %v630 = vadd.f32 %v603, %v622
        %v631 = vadd.f32 %v604, %v623
        %v632 = vmul.f32 %v605, %v241
        %v633 = vmul.f32 %v606, %v243
        %v634 = vmul.f32 %v607, %v245
        %v635 = vmul.f32 %v608, %v247
        %v636 = vmul.f32 %v609, %v249
        %v637 = vmul.f32 %v610, %v251
        %v638 = vmul.f32 %v611, %v253
        %v639 = vmul.f32 %v612, %v255
        %s640 = sadd.s32 %s207, 15
        %s641 = sld [smem:[#allocation2 + %s640]]
        %v642 = vstv %s641
        %v643 = vmul.f32 %v642, %v632
        %v644 = vmul.f32 %v642, %v633
        %v645 = vmul.f32 %v642, %v634
        %v646 = vmul.f32 %v642, %v635
        %v647 = vmul.f32 %v642, %v636
        %v648 = vmul.f32 %v642, %v637
        %v649 = vmul.f32 %v642, %v638
        %v650 = vmul.f32 %v642, %v639
        %v651 = vadd.f32 %v624, %v643
        %v652 = vadd.f32 %v625, %v644
        %v653 = vadd.f32 %v626, %v645
        %v654 = vadd.f32 %v627, %v646
        %v655 = vadd.f32 %v628, %v647
        %v656 = vadd.f32 %v629, %v648
        %v657 = vadd.f32 %v630, %v649
        %v658 = vadd.f32 %v631, %v650
        %v659 = vmul.f32 %v544, %v265
        %v660 = vmul.f32 %v546, %v267
        %v661 = vmul.f32 %v548, %v269
        %v662 = vmul.f32 %v550, %v271
        %v663 = vmul.f32 %v552, %v273
        %v664 = vmul.f32 %v554, %v275
        %v665 = vmul.f32 %v556, %v277
        %v666 = vmul.f32 %v558, %v279
        %s667 = sadd.s32 %s207, 11
        %s668 = sld [smem:[#allocation2 + %s667]]
        %v669 = vstv %s668
        %v670 = vmul.f32 %v669, %v659
        %v671 = vmul.f32 %v669, %v660
        %v672 = vmul.f32 %v669, %v661
        %v673 = vmul.f32 %v669, %v662
        %v674 = vmul.f32 %v669, %v663
        %v675 = vmul.f32 %v669, %v664
        %v676 = vmul.f32 %v669, %v665
        %v677 = vmul.f32 %v669, %v666
        %v678 = vadd.f32 %v651, %v670
        %v679 = vadd.f32 %v652, %v671
        %v680 = vadd.f32 %v653, %v672
        %v681 = vadd.f32 %v654, %v673
        %v682 = vadd.f32 %v655, %v674
        %v683 = vadd.f32 %v656, %v675
        %v684 = vadd.f32 %v657, %v676
        %v685 = vadd.f32 %v658, %v677
        %v686 = vmul.f32 %v659, %v265
        %v687 = vmul.f32 %v660, %v267
        %v688 = vmul.f32 %v661, %v269
        %v689 = vmul.f32 %v662, %v271
        %v690 = vmul.f32 %v663, %v273
        %v691 = vmul.f32 %v664, %v275
        %v692 = vmul.f32 %v665, %v277
        %v693 = vmul.f32 %v666, %v279
        %s694 = sadd.s32 %s207, 10
        %s695 = sld [smem:[#allocation2 + %s694]]
        %v696 = vstv %s695
        %v697 = vmul.f32 %v696, %v686
        %v698 = vmul.f32 %v696, %v687
        %v699 = vmul.f32 %v696, %v688
        %v700 = vmul.f32 %v696, %v689
        %v701 = vmul.f32 %v696, %v690
        %v702 = vmul.f32 %v696, %v691
        %v703 = vmul.f32 %v696, %v692
        %v704 = vmul.f32 %v696, %v693
        %v705 = vadd.f32 %v678, %v697
        %v706 = vadd.f32 %v679, %v698
        %v707 = vadd.f32 %v680, %v699
        %v708 = vadd.f32 %v681, %v700
        %v709 = vadd.f32 %v682, %v701
        %v710 = vadd.f32 %v683, %v702
        %v711 = vadd.f32 %v684, %v703
        %v712 = vadd.f32 %v685, %v704
        %v713 = vmul.f32 %v686, %v265
        %v714 = vmul.f32 %v687, %v267
        %v715 = vmul.f32 %v688, %v269
        %v716 = vmul.f32 %v689, %v271
        %v717 = vmul.f32 %v690, %v273
        %v718 = vmul.f32 %v691, %v275
        %v719 = vmul.f32 %v692, %v277
        %v720 = vmul.f32 %v693, %v279
        %s721 = sadd.s32 %s207, 9
        %s722 = sld [smem:[#allocation2 + %s721]]
        %v723 = vstv %s722
        %v724 = vmul.f32 %v723, %v713
        %v725 = vmul.f32 %v723, %v714
        %v726 = vmul.f32 %v723, %v715
        %v727 = vmul.f32 %v723, %v716
        %v728 = vmul.f32 %v723, %v717
        %v729 = vmul.f32 %v723, %v718
        %v730 = vmul.f32 %v723, %v719
        %v731 = vmul.f32 %v723, %v720
        %v732 = vadd.f32 %v705, %v724
        %v733 = vadd.f32 %v706, %v725
        %v734 = vadd.f32 %v707, %v726
        %v735 = vadd.f32 %v708, %v727
        %v736 = vadd.f32 %v709, %v728
        %v737 = vadd.f32 %v710, %v729
        %v738 = vadd.f32 %v711, %v730
        %v739 = vadd.f32 %v712, %v731
        %v740 = vmul.f32 %v713, %v265
        %v741 = vmul.f32 %v714, %v267
        %v742 = vmul.f32 %v715, %v269
        %v743 = vmul.f32 %v716, %v271
        %v744 = vmul.f32 %v717, %v273
        %v745 = vmul.f32 %v718, %v275
        %v746 = vmul.f32 %v719, %v277
        %v747 = vmul.f32 %v720, %v279
        %s748 = sadd.s32 %s207, 8
        %s749 = sld [smem:[#allocation2 + %s748]]
        %v750 = vstv %s749
        %v751 = vmul.f32 %v750, %v740
        %v752 = vmul.f32 %v750, %v741
        %v753 = vmul.f32 %v750, %v742
        %v754 = vmul.f32 %v750, %v743
        %v755 = vmul.f32 %v750, %v744
        %v756 = vmul.f32 %v750, %v745
        %v757 = vmul.f32 %v750, %v746
        %v758 = vmul.f32 %v750, %v747
        %v759 = vadd.f32 %v732, %v751
        %v760 = vadd.f32 %v733, %v752
        %v761 = vadd.f32 %v734, %v753
        %v762 = vadd.f32 %v735, %v754
        %v763 = vadd.f32 %v736, %v755
        %v764 = vadd.f32 %v737, %v756
        %v765 = vadd.f32 %v738, %v757
        %v766 = vadd.f32 %v739, %v758
        %v767 = vsub.f32 %v224, 0.33333334
        %v768 = vsub.f32 %v225, 0.33333334
        %v769 = vsub.f32 %v226, 0.33333334
        %v770 = vsub.f32 %v227, 0.33333334
        %v771 = vsub.f32 %v228, 0.33333334
        %v772 = vsub.f32 %v229, 0.33333334
        %v773 = vsub.f32 %v230, 0.33333334
        %v774 = vsub.f32 %v231, 0.33333334
        %v775 = vmul.f32 %v767, %v767
        %v776 = vmul.f32 %v768, %v768
        %v777 = vmul.f32 %v769, %v769
        %v778 = vmul.f32 %v770, %v770
        %v779 = vmul.f32 %v771, %v771
        %v780 = vmul.f32 %v772, %v772
        %v781 = vmul.f32 %v773, %v773
        %v782 = vmul.f32 %v774, %v774
        %v783 = vmul.f32 %v775, -112.5
        %v784 = vmul.f32 %v776, -112.5
        %v785 = vmul.f32 %v777, -112.5
        %v786 = vmul.f32 %v778, -112.5
        %v787 = vmul.f32 %v779, -112.5
        %v788 = vmul.f32 %v780, -112.5
        %v789 = vmul.f32 %v781, -112.5
        %v790 = vmul.f32 %v782, -112.5
        %v791 = vmul.f32 %v783, 1.442695
        %v792 = vpow.pop %v791
        %v793 = vmul.f32 %v784, 1.442695
        %v794 = vpow.pop %v793
        %v795 = vmul.f32 %v785, 1.442695
        %v796 = vpow.pop %v795
        %v797 = vmul.f32 %v786, 1.442695
        %v798 = vpow.pop %v797
        %v799 = vmul.f32 %v787, 1.442695
        %v800 = vpow.pop %v799
        %v801 = vmul.f32 %v788, 1.442695
        %v802 = vpow.pop %v801
        %v803 = vmul.f32 %v789, 1.442695
        %v804 = vpow.pop %v803
        %v805 = vmul.f32 %v790, 1.442695
        %v806 = vpow.pop %v805
        %s807 = sadd.s32 %s207, 20
        %s808 = sld [smem:[#allocation2 + %s807]]
        %v809 = vstv %s808
        %v810 = vmul.f32 %v809, %v792
        %v811 = vmul.f32 %v809, %v794
        %v812 = vmul.f32 %v809, %v796
        %v813 = vmul.f32 %v809, %v798
        %v814 = vmul.f32 %v809, %v800
        %v815 = vmul.f32 %v809, %v802
        %v816 = vmul.f32 %v809, %v804
        %v817 = vmul.f32 %v809, %v806
        %v818 = vadd.f32 %v759, %v810
        %v819 = vadd.f32 %v760, %v811
        %v820 = vadd.f32 %v761, %v812
        %v821 = vadd.f32 %v762, %v813
        %v822 = vadd.f32 %v763, %v814
        %v823 = vadd.f32 %v764, %v815
        %v824 = vadd.f32 %v765, %v816
        %v825 = vadd.f32 %v766, %v817
        %v826 = vmul.f32 %v792, %v241
        %v827 = vmul.f32 %v794, %v243
        %v828 = vmul.f32 %v796, %v245
        %v829 = vmul.f32 %v798, %v247
        %v830 = vmul.f32 %v800, %v249
        %v831 = vmul.f32 %v802, %v251
        %v832 = vmul.f32 %v804, %v253
        %v833 = vmul.f32 %v806, %v255
        %s834 = sadd.s32 %s207, 21
        %s835 = sld [smem:[#allocation2 + %s834]]
        %v836 = vstv %s835
        %v837 = vmul.f32 %v836, %v826
        %v838 = vmul.f32 %v836, %v827
        %v839 = vmul.f32 %v836, %v828
        %v840 = vmul.f32 %v836, %v829
        %v841 = vmul.f32 %v836, %v830
        %v842 = vmul.f32 %v836, %v831
        %v843 = vmul.f32 %v836, %v832
        %v844 = vmul.f32 %v836, %v833
        %v845 = vadd.f32 %v818, %v837
        %v846 = vadd.f32 %v819, %v838
        %v847 = vadd.f32 %v820, %v839
        %v848 = vadd.f32 %v821, %v840
        %v849 = vadd.f32 %v822, %v841
        %v850 = vadd.f32 %v823, %v842
        %v851 = vadd.f32 %v824, %v843
        %v852 = vadd.f32 %v825, %v844
        %v853 = vmul.f32 %v826, %v241
        %v854 = vmul.f32 %v827, %v243
        %v855 = vmul.f32 %v828, %v245
        %v856 = vmul.f32 %v829, %v247
        %v857 = vmul.f32 %v830, %v249
        %v858 = vmul.f32 %v831, %v251
        %v859 = vmul.f32 %v832, %v253
        %v860 = vmul.f32 %v833, %v255
        %s861 = sadd.s32 %s207, 22
        %s862 = sld [smem:[#allocation2 + %s861]]
        %v863 = vstv %s862
        %v864 = vmul.f32 %v863, %v853
        %v865 = vmul.f32 %v863, %v854
        %v866 = vmul.f32 %v863, %v855
        %v867 = vmul.f32 %v863, %v856
        %v868 = vmul.f32 %v863, %v857
        %v869 = vmul.f32 %v863, %v858
        %v870 = vmul.f32 %v863, %v859
        %v871 = vmul.f32 %v863, %v860
        %v872 = vadd.f32 %v845, %v864
        %v873 = vadd.f32 %v846, %v865
        %v874 = vadd.f32 %v847, %v866
        %v875 = vadd.f32 %v848, %v867
        %v876 = vadd.f32 %v849, %v868
        %v877 = vadd.f32 %v850, %v869
        %v878 = vadd.f32 %v851, %v870
        %v879 = vadd.f32 %v852, %v871
        %v880 = vmul.f32 %v853, %v241
        %v881 = vmul.f32 %v854, %v243
        %v882 = vmul.f32 %v855, %v245
        %v883 = vmul.f32 %v856, %v247
        %v884 = vmul.f32 %v857, %v249
        %v885 = vmul.f32 %v858, %v251
        %v886 = vmul.f32 %v859, %v253
        %v887 = vmul.f32 %v860, %v255
        %s888 = sadd.s32 %s207, 23
        %s889 = sld [smem:[#allocation2 + %s888]]
        %v890 = vstv %s889
        %v891 = vmul.f32 %v890, %v880
        %v892 = vmul.f32 %v890, %v881
        %v893 = vmul.f32 %v890, %v882
        %v894 = vmul.f32 %v890, %v883
        %v895 = vmul.f32 %v890, %v884
        %v896 = vmul.f32 %v890, %v885
        %v897 = vmul.f32 %v890, %v886
        %v898 = vmul.f32 %v890, %v887
        %v899 = vadd.f32 %v872, %v891
        %v900 = vadd.f32 %v873, %v892
        %v901 = vadd.f32 %v874, %v893
        %v902 = vadd.f32 %v875, %v894
        %v903 = vadd.f32 %v876, %v895
        %v904 = vadd.f32 %v877, %v896
        %v905 = vadd.f32 %v878, %v897
        %v906 = vadd.f32 %v879, %v898
        %v907 = vmul.f32 %v792, %v265
        %v908 = vmul.f32 %v794, %v267
        %v909 = vmul.f32 %v796, %v269
        %v910 = vmul.f32 %v798, %v271
        %v911 = vmul.f32 %v800, %v273
        %v912 = vmul.f32 %v802, %v275
        %v913 = vmul.f32 %v804, %v277
        %v914 = vmul.f32 %v806, %v279
        %s915 = sadd.s32 %s207, 19
        %s916 = sld [smem:[#allocation2 + %s915]]
        %v917 = vstv %s916
        %v918 = vmul.f32 %v917, %v907
        %v919 = vmul.f32 %v917, %v908
        %v920 = vmul.f32 %v917, %v909
        %v921 = vmul.f32 %v917, %v910
        %v922 = vmul.f32 %v917, %v911
        %v923 = vmul.f32 %v917, %v912
        %v924 = vmul.f32 %v917, %v913
        %v925 = vmul.f32 %v917, %v914
        %v926 = vadd.f32 %v899, %v918
        %v927 = vadd.f32 %v900, %v919
        %v928 = vadd.f32 %v901, %v920
        %v929 = vadd.f32 %v902, %v921
        %v930 = vadd.f32 %v903, %v922
        %v931 = vadd.f32 %v904, %v923
        %v932 = vadd.f32 %v905, %v924
        %v933 = vadd.f32 %v906, %v925
        %v934 = vmul.f32 %v907, %v265
        %v935 = vmul.f32 %v908, %v267
        %v936 = vmul.f32 %v909, %v269
        %v937 = vmul.f32 %v910, %v271
        %v938 = vmul.f32 %v911, %v273
        %v939 = vmul.f32 %v912, %v275
        %v940 = vmul.f32 %v913, %v277
        %v941 = vmul.f32 %v914, %v279
        %s942 = sadd.s32 %s207, 18
        %s943 = sld [smem:[#allocation2 + %s942]]
        %v944 = vstv %s943
        %v945 = vmul.f32 %v944, %v934
        %v946 = vmul.f32 %v944, %v935
        %v947 = vmul.f32 %v944, %v936
        %v948 = vmul.f32 %v944, %v937
        %v949 = vmul.f32 %v944, %v938
        %v950 = vmul.f32 %v944, %v939
        %v951 = vmul.f32 %v944, %v940
        %v952 = vmul.f32 %v944, %v941
        %v953 = vadd.f32 %v926, %v945
        %v954 = vadd.f32 %v927, %v946
        %v955 = vadd.f32 %v928, %v947
        %v956 = vadd.f32 %v929, %v948
        %v957 = vadd.f32 %v930, %v949
        %v958 = vadd.f32 %v931, %v950
        %v959 = vadd.f32 %v932, %v951
        %v960 = vadd.f32 %v933, %v952
        %v961 = vmul.f32 %v934, %v265
        %v962 = vmul.f32 %v935, %v267
        %v963 = vmul.f32 %v936, %v269
        %v964 = vmul.f32 %v937, %v271
        %v965 = vmul.f32 %v938, %v273
        %v966 = vmul.f32 %v939, %v275
        %v967 = vmul.f32 %v940, %v277
        %v968 = vmul.f32 %v941, %v279
        %s969 = sadd.s32 %s207, 17
        %s970 = sld [smem:[#allocation2 + %s969]]
        %v971 = vstv %s970
        %v972 = vmul.f32 %v971, %v961
        %v973 = vmul.f32 %v971, %v962
        %v974 = vmul.f32 %v971, %v963
        %v975 = vmul.f32 %v971, %v964
        %v976 = vmul.f32 %v971, %v965
        %v977 = vmul.f32 %v971, %v966
        %v978 = vmul.f32 %v971, %v967
        %v979 = vmul.f32 %v971, %v968
        %v980 = vadd.f32 %v953, %v972
        %v981 = vadd.f32 %v954, %v973
        %v982 = vadd.f32 %v955, %v974
        %v983 = vadd.f32 %v956, %v975
        %v984 = vadd.f32 %v957, %v976
        %v985 = vadd.f32 %v958, %v977
        %v986 = vadd.f32 %v959, %v978
        %v987 = vadd.f32 %v960, %v979
        %v988 = vmul.f32 %v961, %v265
        %v989 = vmul.f32 %v962, %v267
        %v990 = vmul.f32 %v963, %v269
        %v991 = vmul.f32 %v964, %v271
        %v992 = vmul.f32 %v965, %v273
        %v993 = vmul.f32 %v966, %v275
        %v994 = vmul.f32 %v967, %v277
        %v995 = vmul.f32 %v968, %v279
        %s996 = sadd.s32 %s207, 16
        %s997 = sld [smem:[#allocation2 + %s996]]
        %v998 = vstv %s997
        %v999 = vmul.f32 %v998, %v988
        %v1000 = vmul.f32 %v998, %v989
        %v1001 = vmul.f32 %v998, %v990
        %v1002 = vmul.f32 %v998, %v991
        %v1003 = vmul.f32 %v998, %v992
        %v1004 = vmul.f32 %v998, %v993
        %v1005 = vmul.f32 %v998, %v994
        %v1006 = vmul.f32 %v998, %v995
        %v1007 = vadd.f32 %v980, %v999
        %v1008 = vadd.f32 %v981, %v1000
        %v1009 = vadd.f32 %v982, %v1001
        %v1010 = vadd.f32 %v983, %v1002
        %v1011 = vadd.f32 %v984, %v1003
        %v1012 = vadd.f32 %v985, %v1004
        %v1013 = vadd.f32 %v986, %v1005
        %v1014 = vadd.f32 %v987, %v1006
        %v1015 = vsub.f32 %v224, 0.8
        %v1016 = vsub.f32 %v225, 0.8
        %v1017 = vsub.f32 %v226, 0.8
        %v1018 = vsub.f32 %v227, 0.8
        %v1019 = vsub.f32 %v228, 0.8
        %v1020 = vsub.f32 %v229, 0.8
        %v1021 = vsub.f32 %v230, 0.8
        %v1022 = vsub.f32 %v231, 0.8
        %v1023 = vmul.f32 %v1015, %v1015
        %v1024 = vmul.f32 %v1016, %v1016
        %v1025 = vmul.f32 %v1017, %v1017
        %v1026 = vmul.f32 %v1018, %v1018
        %v1027 = vmul.f32 %v1019, %v1019
        %v1028 = vmul.f32 %v1020, %v1020
        %v1029 = vmul.f32 %v1021, %v1021
        %v1030 = vmul.f32 %v1022, %v1022
        %v1031 = vmul.f32 %v1023, -112.5
        %v1032 = vmul.f32 %v1024, -112.5
        %v1033 = vmul.f32 %v1025, -112.5
        %v1034 = vmul.f32 %v1026, -112.5
        %v1035 = vmul.f32 %v1027, -112.5
        %v1036 = vmul.f32 %v1028, -112.5
        %v1037 = vmul.f32 %v1029, -112.5
        %v1038 = vmul.f32 %v1030, -112.5
        %v1039 = vmul.f32 %v1031, 1.442695
        %v1040 = vpow.pop %v1039
        %v1041 = vmul.f32 %v1032, 1.442695
        %v1042 = vpow.pop %v1041
        %v1043 = vmul.f32 %v1033, 1.442695
        %v1044 = vpow.pop %v1043
        %v1045 = vmul.f32 %v1034, 1.442695
        %v1046 = vpow.pop %v1045
        %v1047 = vmul.f32 %v1035, 1.442695
        %v1048 = vpow.pop %v1047
        %v1049 = vmul.f32 %v1036, 1.442695
        %v1050 = vpow.pop %v1049
        %v1051 = vmul.f32 %v1037, 1.442695
        %v1052 = vpow.pop %v1051
        %v1053 = vmul.f32 %v1038, 1.442695
        %v1054 = vpow.pop %v1053
        %s1055 = sadd.s32 %s207, 27
        %s1056 = sld [smem:[#allocation2 + %s1055]]
        %v1057 = vstv %s1056
        %v1058 = vmul.f32 %v1057, %v1040
        %v1059 = vmul.f32 %v1057, %v1042
        %v1060 = vmul.f32 %v1057, %v1044
        %v1061 = vmul.f32 %v1057, %v1046
        %v1062 = vmul.f32 %v1057, %v1048
        %v1063 = vmul.f32 %v1057, %v1050
        %v1064 = vmul.f32 %v1057, %v1052
        %v1065 = vmul.f32 %v1057, %v1054
        %v1066 = vadd.f32 %v1007, %v1058
        %v1067 = vadd.f32 %v1008, %v1059
        %v1068 = vadd.f32 %v1009, %v1060
        %v1069 = vadd.f32 %v1010, %v1061
        %v1070 = vadd.f32 %v1011, %v1062
        %v1071 = vadd.f32 %v1012, %v1063
        %v1072 = vadd.f32 %v1013, %v1064
        %v1073 = vadd.f32 %v1014, %v1065
        %v1074 = vmul.f32 %v1040, %v241
        %v1075 = vmul.f32 %v1042, %v243
        %v1076 = vmul.f32 %v1044, %v245
        %v1077 = vmul.f32 %v1046, %v247
        %v1078 = vmul.f32 %v1048, %v249
        %v1079 = vmul.f32 %v1050, %v251
        %v1080 = vmul.f32 %v1052, %v253
        %v1081 = vmul.f32 %v1054, %v255
        %s1082 = sadd.s32 %s207, 28
        %s1083 = sld [smem:[#allocation2 + %s1082]]
        %v1084 = vstv %s1083
        %v1085 = vmul.f32 %v1084, %v1074
        %v1086 = vmul.f32 %v1084, %v1075
        %v1087 = vmul.f32 %v1084, %v1076
        %v1088 = vmul.f32 %v1084, %v1077
        %v1089 = vmul.f32 %v1084, %v1078
        %v1090 = vmul.f32 %v1084, %v1079
        %v1091 = vmul.f32 %v1084, %v1080
        %v1092 = vmul.f32 %v1084, %v1081
        %v1093 = vadd.f32 %v1066, %v1085
        %v1094 = vadd.f32 %v1067, %v1086
        %v1095 = vadd.f32 %v1068, %v1087
        %v1096 = vadd.f32 %v1069, %v1088
        %v1097 = vadd.f32 %v1070, %v1089
        %v1098 = vadd.f32 %v1071, %v1090
        %v1099 = vadd.f32 %v1072, %v1091
        %v1100 = vadd.f32 %v1073, %v1092
        %v1101 = vmul.f32 %v1074, %v241
        %v1102 = vmul.f32 %v1075, %v243
        %v1103 = vmul.f32 %v1076, %v245
        %v1104 = vmul.f32 %v1077, %v247
        %v1105 = vmul.f32 %v1078, %v249
        %v1106 = vmul.f32 %v1079, %v251
        %v1107 = vmul.f32 %v1080, %v253
        %v1108 = vmul.f32 %v1081, %v255
        %s1109 = sadd.s32 %s207, 29
        %s1110 = sld [smem:[#allocation2 + %s1109]]
        %v1111 = vstv %s1110
        %v1112 = vmul.f32 %v1111, %v1101
        %v1113 = vmul.f32 %v1111, %v1102
        %v1114 = vmul.f32 %v1111, %v1103
        %v1115 = vmul.f32 %v1111, %v1104
        %v1116 = vmul.f32 %v1111, %v1105
        %v1117 = vmul.f32 %v1111, %v1106
        %v1118 = vmul.f32 %v1111, %v1107
        %v1119 = vmul.f32 %v1111, %v1108
        %v1120 = vadd.f32 %v1093, %v1112
        %v1121 = vadd.f32 %v1094, %v1113
        %v1122 = vadd.f32 %v1095, %v1114
        %v1123 = vadd.f32 %v1096, %v1115
        %v1124 = vadd.f32 %v1097, %v1116
        %v1125 = vadd.f32 %v1098, %v1117
        %v1126 = vadd.f32 %v1099, %v1118
        %v1127 = vadd.f32 %v1100, %v1119
        %v1128 = vmul.f32 %v1101, %v241
        %v1129 = vmul.f32 %v1102, %v243
        %v1130 = vmul.f32 %v1103, %v245
        %v1131 = vmul.f32 %v1104, %v247
        %v1132 = vmul.f32 %v1105, %v249
        %v1133 = vmul.f32 %v1106, %v251
        %v1134 = vmul.f32 %v1107, %v253
        %v1135 = vmul.f32 %v1108, %v255
        %s1136 = sadd.s32 %s207, 30
        %s1137 = sld [smem:[#allocation2 + %s1136]]
        %v1138 = vstv %s1137
        %v1139 = vmul.f32 %v1138, %v1128
        %v1140 = vmul.f32 %v1138, %v1129
        %v1141 = vmul.f32 %v1138, %v1130
        %v1142 = vmul.f32 %v1138, %v1131
        %v1143 = vmul.f32 %v1138, %v1132
        %v1144 = vmul.f32 %v1138, %v1133
        %v1145 = vmul.f32 %v1138, %v1134
        %v1146 = vmul.f32 %v1138, %v1135
        %v1147 = vadd.f32 %v1120, %v1139
        %v1148 = vadd.f32 %v1121, %v1140
        %v1149 = vadd.f32 %v1122, %v1141
        %v1150 = vadd.f32 %v1123, %v1142
        %v1151 = vadd.f32 %v1124, %v1143
        %v1152 = vadd.f32 %v1125, %v1144
        %v1153 = vadd.f32 %v1126, %v1145
        %v1154 = vadd.f32 %v1127, %v1146
        %v1155 = vmul.f32 %v1040, %v265
        %v1156 = vmul.f32 %v1042, %v267
        %v1157 = vmul.f32 %v1044, %v269
        %v1158 = vmul.f32 %v1046, %v271
        %v1159 = vmul.f32 %v1048, %v273
        %v1160 = vmul.f32 %v1050, %v275
        %v1161 = vmul.f32 %v1052, %v277
        %v1162 = vmul.f32 %v1054, %v279
        %s1163 = sadd.s32 %s207, 26
        %s1164 = sld [smem:[#allocation2 + %s1163]]
        %v1165 = vstv %s1164
        %v1166 = vmul.f32 %v1165, %v1155
        %v1167 = vmul.f32 %v1165, %v1156
        %v1168 = vmul.f32 %v1165, %v1157
        %v1169 = vmul.f32 %v1165, %v1158
        %v1170 = vmul.f32 %v1165, %v1159
        %v1171 = vmul.f32 %v1165, %v1160
        %v1172 = vmul.f32 %v1165, %v1161
        %v1173 = vmul.f32 %v1165, %v1162
        %v1174 = vadd.f32 %v1147, %v1166
        %v1175 = vadd.f32 %v1148, %v1167
        %v1176 = vadd.f32 %v1149, %v1168
        %v1177 = vadd.f32 %v1150, %v1169
        %v1178 = vadd.f32 %v1151, %v1170
        %v1179 = vadd.f32 %v1152, %v1171
        %v1180 = vadd.f32 %v1153, %v1172
        %v1181 = vadd.f32 %v1154, %v1173
        %v1182 = vmul.f32 %v1155, %v265
        %v1183 = vmul.f32 %v1156, %v267
        %v1184 = vmul.f32 %v1157, %v269
        %v1185 = vmul.f32 %v1158, %v271
        %v1186 = vmul.f32 %v1159, %v273
        %v1187 = vmul.f32 %v1160, %v275
        %v1188 = vmul.f32 %v1161, %v277
        %v1189 = vmul.f32 %v1162, %v279
        %s1190 = sadd.s32 %s207, 25
        %s1191 = sld [smem:[#allocation2 + %s1190]]
        %v1192 = vstv %s1191
        %v1193 = vmul.f32 %v1192, %v1182
        %v1194 = vmul.f32 %v1192, %v1183
        %v1195 = vmul.f32 %v1192, %v1184
        %v1196 = vmul.f32 %v1192, %v1185
        %v1197 = vmul.f32 %v1192, %v1186
        %v1198 = vmul.f32 %v1192, %v1187
        %v1199 = vmul.f32 %v1192, %v1188
        %v1200 = vmul.f32 %v1192, %v1189
        %v1201 = vadd.f32 %v1174, %v1193
        %v1202 = vadd.f32 %v1175, %v1194
        %v1203 = vadd.f32 %v1176, %v1195
        %v1204 = vadd.f32 %v1177, %v1196
        %v1205 = vadd.f32 %v1178, %v1197
        %v1206 = vadd.f32 %v1179, %v1198
        %v1207 = vadd.f32 %v1180, %v1199
        %v1208 = vadd.f32 %v1181, %v1200
        %v1209 = vmul.f32 %v1182, %v265
        %v1210 = vmul.f32 %v1183, %v267
        %v1211 = vmul.f32 %v1184, %v269
        %v1212 = vmul.f32 %v1185, %v271
        %v1213 = vmul.f32 %v1186, %v273
        %v1214 = vmul.f32 %v1187, %v275
        %v1215 = vmul.f32 %v1188, %v277
        %v1216 = vmul.f32 %v1189, %v279
        %s1217 = sadd.s32 %s207, 24
        %s1218 = sld [smem:[#allocation2 + %s1217]]
        %v1219 = vstv %s1218
        %v1220 = vmul.f32 %v1219, %v1209
        %v1221 = vmul.f32 %v1219, %v1210
        %v1222 = vmul.f32 %v1219, %v1211
        %v1223 = vmul.f32 %v1219, %v1212
        %v1224 = vmul.f32 %v1219, %v1213
        %v1225 = vmul.f32 %v1219, %v1214
        %v1226 = vmul.f32 %v1219, %v1215
        %v1227 = vmul.f32 %v1219, %v1216
        %v1228 = vadd.f32 %v1201, %v1220
        %v1229 = vadd.f32 %v1202, %v1221
        %v1230 = vadd.f32 %v1203, %v1222
        %v1231 = vadd.f32 %v1204, %v1223
        %v1232 = vadd.f32 %v1205, %v1224
        %v1233 = vadd.f32 %v1206, %v1225
        %v1234 = vadd.f32 %v1207, %v1226
        %v1235 = vadd.f32 %v1208, %v1227
        %1236 = vst [vmem:[%s206] sm:$0xff] %v1228
        %1237 = vst [vmem:[%s206 + $0x8] sm:$0xff] %v1229
        %1238 = vst [vmem:[%s206 + $0x10] sm:$0xff] %v1230
        %1239 = vst [vmem:[%s206 + $0x18] sm:$0xff] %v1231
        %1240 = vst [vmem:[%s206 + $0x20] sm:$0xff] %v1232
        %1241 = vst [vmem:[%s206 + $0x28] sm:$0xff] %v1233
        %1242 = vst [vmem:[%s206 + $0x30] sm:$0xff] %v1234
        %1243 = vst [vmem:[%s206 + $0x38] sm:$0xff] %v1235
        %s1244 = sand.u32 %s102, 1
        %s1245 = scalar_lea.sflag [#allocation4], %s1244
        %s1246 = sand.u32 %s102, 1
        %s1247 = smul.addr %s1246, 64
        %s1248 = scalar_lea.vmem [#allocation7], %s1247
        // Predicated region
        $region37: #{tpu_custom_call.1} parent=27 // pred_check
          %p1249 = pneg %p112
        $region38: #{tpu_custom_call.1} parent=27 // pred_check_branch
          %1251 = sbr.rel (%p1249) target = $region40
        $region39: #{tpu_custom_call.1} parent=27 // pred_region
          %1253 = vsyncadd %s1245, 0
          %s1254 = smul.addr %s27, 8
          %s1255 = smul.addr %s26, 8
          %s1256 = sadd.s32 %s1254, %s1255
          %s1257 = smul.addr %s25, 32
          %s1258 = sadd.s32 %s1256, %s1257
          %s1259 = smul.addr %s1258, 8
          %s1260 = scalar_lea.hbm %s2, %s1259
          %s1262 = sshll.u32 %s1248, 4
          %s1263 = int_to_ptr.vmem [resolvable:$true] %s1262
          %s1264 = sshll.u32 %s1260, 4
          %s1265 = int_to_ptr.hbm [resolvable:$true] %s1264
          %1267 = dma.vmem_to_hbm [thread:$0]  %s1263, 1024, %s1265, %s1245
        $region40: #{tpu_custom_call.1} parent=27 // pred_fallthru
          _
      $region28: #{tpu_custom_call.1} parent=5 // pred_fallthru
        _
      %p1268 = scmp.le.s32.totalorder 2, %s15
      // Predicated region
      $region41: #{tpu_custom_call.1} parent=5 // pred_check
        %p1269 = pneg %p1268
      $region42: #{tpu_custom_call.1} parent=5 // pred_check_branch
        %1271 = sbr.rel (%p1269) target = $region44
      $region43: #{tpu_custom_call.1} parent=5 // pred_region
        %s1272 = ssub.s32 %s15, 2
        // Predicated region
        $region45: #{tpu_custom_call.1} parent=43 // pred_check
          %p1273 = pneg %p118
        $region46: #{tpu_custom_call.1} parent=43 // pred_check_branch
          %1275 = sbr.rel (%p1273) target = $region48
        $region47: #{tpu_custom_call.1} parent=43 // pred_region
          %s1276 = sand.u32 %s103, 1
          %s1277 = scalar_lea.sflag [#allocation4], %s1276
          %s1278 = sand.u32 %s103, 1
          %s1279 = smul.addr %s1278, 64
          %s1280 = scalar_lea.vmem [#allocation7], %s1279
          %1282 = dma.done %s1277, 1024
        $region48: #{tpu_custom_call.1} parent=43 // pred_fallthru
          _
      $region44: #{tpu_custom_call.1} parent=5 // pred_fallthru
        _
    $region6: #{tpu_custom_call.1} parent=1 // loop_footer
      %s19 = sadd.s32 1, %s15
    $region7: #{tpu_custom_call.1} parent=1 // loop_footer_branch
      %14 = sbr.rel target = $region3
    $region8: #{tpu_custom_call.1} parent=1 // loop_exit
      _
    %1283 = vsyncpa [#allocation3], 1
    %s1284 = scalar_lea.sflag [#allocation3], 1
    %1285 = vsyncpa %s1284, 1
    %1286 = vsyncpa [#allocation4], 1
    %s1287 = scalar_lea.sflag [#allocation4], 1
    %1288 = vsyncpa %s1287, 1
    %1289 = vsyncpa [#allocation5], 1
    %s1290 = scalar_lea.sflag [#allocation5], 1
    %1291 = vsyncpa %s1290, 1

</llo_original>
